<compile_context>
chip_gen: v5e
topology: v5e:2x2
jax: 0.10.0
libtpu: 0.0.40
codegen_flags: <defaults>
</compile_context>

<pallas_src>
import jax
import jax.numpy as jnp
import numpy as np
from jax.experimental import pallas as pl
from jax.experimental.pallas import tpu as pltpu

_LANE = 128                    # pad every channel dim to one full vreg of lanes
_MXU_DTYPE = jnp.bfloat16      # matmul operand dtype (accumulation stays f32)


def _round_up(v, m):
    return ((v + m - 1) // m) * m


# ----------------------------------------------------------------------------
# Fused kernel
# ----------------------------------------------------------------------------
def _make_recovery_kernel(dilations, has_downsample0, dpad):
    """dilations: static per-layer dilations; dpad: halo rows (multiple of 8)."""

    def kernel(*refs):
        if has_downsample0:
            (x_ref, wc_ref, bc_ref, wd_ref, bd_ref, wfc_ref, bfc_ref,
             o_ref, sbuf_ref) = refs
        else:
            (x_ref, wc_ref, bc_ref, wfc_ref, bfc_ref, o_ref, sbuf_ref) = refs

        Bt, T, Cin = x_ref.shape
        P = _LANE
        M = Bt * T
        Dout = o_ref.shape[2]

        # Zero the whole scratch once: halo rows stay zero forever, body rows
        # beyond Cin lanes give us the channel padding of x for free.
        sbuf_ref[...] = jnp.zeros_like(sbuf_ref)
        sbuf_ref[:, dpad:dpad + T, 0:Cin] = x_ref[...]
        h = sbuf_ref[:, dpad:dpad + T, :].reshape(M, P)          # (M, P) f32

        def shifted_bf16(v, d):
            # shift_d(v)[b, t] = v[b, t-d] (zeros for t < d), per batch row.
            if d >= T:                                # entire window is padding
                return jnp.zeros((M, P), _MXU_DTYPE)
            # TODO(synk): benchmark pltpu.roll(v, d, 0) + iota row-mask instead
            # of the store/load shift (moves the shift to the idle XLU slot).
            sbuf_ref[:, dpad:dpad + T, :] = v.reshape(Bt, T, P)
            s = sbuf_ref[:, dpad - d:dpad - d + T, :]
            return s.reshape(M, P).astype(_MXU_DTYPE)

        def conv_relu(v, w_cat, b, d):
            # Causal dilated conv k=2: out[t] = W0 @ v[t-d] + W1 @ v[t] + b,
            # folded into ONE K=256 matmul. bf16 operands built BEFORE the
            # concat; f32 MXU accumulation; f32 epilogue.
            # TODO(synk): on v5e (128-deep MXU) split into two K=128 dots.
            vin = jnp.concatenate([shifted_bf16(v, d), v.astype(_MXU_DTYPE)],
                                  axis=-1)                        # (M, 2P) bf16
            y = jnp.dot(vin, w_cat, preferred_element_type=jnp.float32) + b
            return jnp.maximum(y, 0.0)                            # ReLU, f32

        for i, d in enumerate(dilations):                         # unrolled
            a = conv_relu(h, wc_ref[2 * i],     bc_ref[2 * i],     d)
            a = conv_relu(a, wc_ref[2 * i + 1], bc_ref[2 * i + 1], d)
            if i == 0 and has_downsample0:                        # 1x1-conv res
                # TODO(synk): on v6e/v7x fold wd into extra output columns of
                # wconv[0] so a single N=256 matmul yields conv1 + residual.
                res = jnp.dot(h.astype(_MXU_DTYPE), wd_ref[...],
                              preferred_element_type=jnp.float32) + bd_ref[...]
            else:                                                 # identity res
                res = h
            h = jnp.maximum(a + res, 0.0)

        # tanh -> Linear, stored at natural output width.
        t = jnp.tanh(h)
        y = jnp.dot(t.astype(_MXU_DTYPE), wfc_ref[...],
                    preferred_element_type=jnp.float32) + bfc_ref[...]
        o_ref[...] = y.reshape(Bt, T, P)[:, :, 0:Dout]

    return kernel


# ----------------------------------------------------------------------------
# Host-side packing: stack conv taps, zero-pad channel dims of WEIGHTS to 128
# ----------------------------------------------------------------------------
def _pad_to(a, shape):
    out = jnp.zeros(shape, a.dtype)
    return out.at[tuple(slice(0, s) for s in a.shape)].set(a)


def pack_params(params):
    P = _LANE
    blocks = params["blocks"]
    L = len(blocks)
    # wconv[2i]   : conv1 of layer i, rows [0:P]=shifted tap W0, [P:2P]=current tap W1
    # wconv[2i+1] : conv2 of layer i
    wconv = jnp.zeros((2 * L, 2 * P, P), jnp.float32)
    bconv = jnp.zeros((2 * L, 1, P), jnp.float32)
    for i, blk in enumerate(blocks):
        cin, cout = blk["w1a"].shape
        assert cin <= P and cout <= P, "channel dims must fit one lane tile"
        wconv = wconv.at[2 * i, :cin, :cout].set(blk["w1a"])
        wconv = wconv.at[2 * i, P:P + cin, :cout].set(blk["w1b"])
        bconv = bconv.at[2 * i, 0, :cout].set(blk["b1"][0])
        wconv = wconv.at[2 * i + 1, :cout, :cout].set(blk["w2a"])
        wconv = wconv.at[2 * i + 1, P:P + cout, :cout].set(blk["w2b"])
        bconv = bconv.at[2 * i + 1, 0, :cout].set(blk["b2"][0])
        if i > 0:
            assert not blk["has_downsample"], "only layer 0 may change width"

    assert params["w_fc"].shape[1] <= P
    packed = {
        "dilations": tuple(int(b["dilation"]) for b in blocks),
        "has_ds0": bool(blocks[0]["has_downsample"]),
        "wconv": wconv.astype(_MXU_DTYPE),
        "bconv": bconv,
        "wfc": _pad_to(params["w_fc"], (P, P)).astype(_MXU_DTYPE),
        "bfc": _pad_to(params["b_fc"], (1, P)),
        "out_dim": int(params["w_fc"].shape[1]),
    }
    if packed["has_ds0"]:
        packed["wd"] = _pad_to(blocks[0]["wd"], (P, P)).astype(_MXU_DTYPE)
        packed["bd"] = _pad_to(blocks[0]["bd"], (1, P))
    return packed


# ----------------------------------------------------------------------------
# Wrapper
# ----------------------------------------------------------------------------
def _pick_batch_block(B, T, target_m=512):
    """Largest divisor Bt of B with Bt*T <= target_m and >=2 grid steps (B>1)."""
    best = 1
    for bt in range(1, B + 1):
        if B % bt != 0:
            continue
        if bt * T > max(target_m, T):
            continue
        if B > 1 and B // bt < 2:          # keep both v7x TensorCores busy
            continue
        best = bt
    return best


def recovery_forward(x, params, packed=None):
    """x: (B, T, input_size) f32 -> (B, T, output_dim) f32."""
    if packed is None:
        packed = pack_params(params)
    P = _LANE
    B, T, Cin = x.shape
    assert Cin <= P
    dil = packed["dilations"]
    L = len(dil)
    Dout = packed["out_dim"]

    Bt = _pick_batch_block(B, T)
    grid = (B // Bt,)

    ds_lt = [d for d in dil if d < T]
    dpad = _round_up(max(ds_lt), 8) if ds_lt else 8      # causal halo rows

    in_specs = [
        pl.BlockSpec((Bt, T, Cin), lambda b: (b, 0, 0)),          # x, natural width
        pl.BlockSpec((2 * L, 2 * P, P), lambda b: (0, 0, 0)),     # stacked conv W
        pl.BlockSpec((2 * L, 1, P), lambda b: (0, 0, 0)),         # stacked conv b
    ]
    args = [x.astype(jnp.float32), packed["wconv"], packed["bconv"]]
    if packed["has_ds0"]:
        in_specs += [pl.BlockSpec((P, P), lambda b: (0, 0)),
                     pl.BlockSpec((1, P), lambda b: (0, 0))]
        args += [packed["wd"], packed["bd"]]
    in_specs += [pl.BlockSpec((P, P), lambda b: (0, 0)),           # fc weight
                 pl.BlockSpec((1, P), lambda b: (0, 0))]           # fc bias
    args += [packed["wfc"], packed["bfc"]]

    out = pl.pallas_call(
        _make_recovery_kernel(dil, packed["has_ds0"], dpad),
        out_shape=jax.ShapeDtypeStruct((B, T, Dout), jnp.float32),
        grid=grid,
        in_specs=in_specs,
        out_specs=pl.BlockSpec((Bt, T, Dout), lambda b: (b, 0, 0)),
        scratch_shapes=[pltpu.VMEM((Bt, dpad + T, P), jnp.float32)],
        compiler_params=pltpu.CompilerParams(
            dimension_semantics=("parallel",),
            vmem_limit_bytes=48 * 1024 * 1024),   # within v7x's 64 MiB VMEM
    )(*args)
    # TODO(synk): for very long T, tile the time axis with a max-dilation causal
    # halo per tile instead of one full-T block per batch slab (v7x VMEM budget).
    return out


# ----------------------------------------------------------------------------
# Deterministic synthetic parameters (shapes implied by the nn.Module __init__)
# ----------------------------------------------------------------------------
def init_params(key, input_size, hidden_dim, output_dim, num_layers):
    params = {"blocks": []}
    for i in range(num_layers):
        cin = input_size if i == 0 else hidden_dim
        cout = hidden_dim
        key, *ks = jax.random.split(key, 9)
        blk = {
            "dilation": 2 ** i,
            "has_downsample": cin != cout,
            # conv weight (Cout, Cin, 2) split along the kernel tap and transposed
            "w1a": jax.random.normal(ks[0], (cin, cout), jnp.float32) * 0.1,
            "w1b": jax.random.normal(ks[1], (cin, cout), jnp.float32) * 0.1,
            "b1":  jax.random.normal(ks[2], (1, cout), jnp.float32) * 0.1,
            "w2a": jax.random.normal(ks[3], (cout, cout), jnp.float32) * 0.1,
            "w2b": jax.random.normal(ks[4], (cout, cout), jnp.float32) * 0.1,
            "b2":  jax.random.normal(ks[5], (1, cout), jnp.float32) * 0.1,
        }
        if blk["has_downsample"]:
            blk["wd"] = jax.random.normal(ks[6], (cin, cout), jnp.float32) * 0.1
            blk["bd"] = jax.random.normal(ks[7], (1, cout), jnp.float32) * 0.1
        params["blocks"].append(blk)
    key, k1, k2 = jax.random.split(key, 3)
    params["w_fc"] = jax.random.normal(k1, (hidden_dim, output_dim), jnp.float32) * 0.1
    params["b_fc"] = jax.random.normal(k2, (1, output_dim), jnp.float32) * 0.1
    return params


# ----------------------------------------------------------------------------
# Pure-JAX f32 reference (same math, no Pallas) for a correctness check
# ----------------------------------------------------------------------------
def recovery_reference(x, params):
    def shift(a, d):
        return jnp.pad(a, ((0, 0), (d, 0), (0, 0)))[:, : a.shape[1], :]

    h = x
    for blk in params["blocks"]:
        d = blk["dilation"]
        a = jax.nn.relu(shift(h, d) @ blk["w1a"] + h @ blk["w1b"] + blk["b1"])
        a = jax.nn.relu(shift(a, d) @ blk["w2a"] + a @ blk["w2b"] + blk["b2"])
        res = (h @ blk["wd"] + blk["bd"]) if blk["has_downsample"] else h
        h = jax.nn.relu(a + res)
    return jnp.tanh(h) @ params["w_fc"] + params["b_fc"]


# ----------------------------------------------------------------------------
if __name__ == "__main__":
    # Small shapes consistent with the module (time_stamp=T, input_size,
    # hidden_dim, output_dim, num_layers), scaled down for a quick test.
    # num_layers=5 exercises dilations {1,2,4,8,16} including d >= T.
    B, T = 4, 16
    input_size, hidden_dim, output_dim, num_layers = 10, 8, 12, 5

    key = jax.random.PRNGKey(0)
    kx, kp = jax.random.split(key)
    x = jax.random.normal(kx, (B, T, input_size), jnp.float32)   # (batch, time, feat)
    params = init_params(kp, input_size, hidden_dim, output_dim, num_layers)

    out = jax.block_until_ready(recovery_forward(x, params))
    ref = jax.block_until_ready(recovery_reference(x, params))

    assert out.shape == (B, T, output_dim), out.shape
    # Kernel uses bf16 MXU operands (f32 accumulate) across 2L conv matmuls vs a
    # pure-f32 reference, hence the loose tolerance.
    np.testing.assert_allclose(np.asarray(out), np.asarray(ref), rtol=5e-2, atol=5e-2)
    print("KERNEL_OK")
</pallas_src>

<mosaic_0001>
module attributes {stable_mosaic.version = 11 : i64} {
  func.func @kernel(%arg0: i32, %arg1: memref<2x16x10xf32, #tpu.memory_space<vmem>>, %arg2: memref<10x256x128xbf16, #tpu.memory_space<vmem>>, %arg3: memref<10x1x128xf32, #tpu.memory_space<vmem>>, %arg4: memref<128x128xbf16, #tpu.memory_space<vmem>>, %arg5: memref<1x128xf32, #tpu.memory_space<vmem>>, %arg6: memref<128x128xbf16, #tpu.memory_space<vmem>>, %arg7: memref<1x128xf32, #tpu.memory_space<vmem>>, %arg8: memref<2x16x12xf32, #tpu.memory_space<vmem>>, %arg9: memref<2x24x128xf32, #tpu.memory_space<vmem>>) attributes {dimension_semantics = [#tpu.dimension_semantics<parallel>], iteration_bounds = array<i64: 2>, scalar_prefetch = 0 : i64, scratch_operands = 1 : i64, tpu.core_type = #tpu.core_type<tc>, window_params = [{transform_indices = @transform_0, window_bounds = array<i64: 2, 16, 10>}, {pipeline_mode = #tpu.pipeline_mode<synchronous>, transform_indices = @transform_1, window_bounds = array<i64: 10, 256, 128>}, {pipeline_mode = #tpu.pipeline_mode<synchronous>, transform_indices = @transform_2, window_bounds = array<i64: 10, 1, 128>}, {pipeline_mode = #tpu.pipeline_mode<synchronous>, transform_indices = @transform_3, window_bounds = array<i64: 128, 128>}, {pipeline_mode = #tpu.pipeline_mode<synchronous>, transform_indices = @transform_4, window_bounds = array<i64: 1, 128>}, {pipeline_mode = #tpu.pipeline_mode<synchronous>, transform_indices = @transform_5, window_bounds = array<i64: 128, 128>}, {pipeline_mode = #tpu.pipeline_mode<synchronous>, transform_indices = @transform_6, window_bounds = array<i64: 1, 128>}, {transform_indices = @transform_7, window_bounds = array<i64: 2, 16, 12>}]} {
    %cst = arith.constant 0.000000e+00 : f32
    %0 = vector.broadcast %cst : f32 to vector<2x24x128xf32>
    %c0 = arith.constant 0 : index
    %c0_0 = arith.constant 0 : index
    %c0_1 = arith.constant 0 : index
    %1 = vector.load %arg9[%c0, %c0_0, %c0_1] : memref<2x24x128xf32, #tpu.memory_space<vmem>>, vector<2x24x128xf32>
    tpu.vector_store %arg9[%c0, %c0_0, %c0_1], %0 {strides = array<i32>} : memref<2x24x128xf32, #tpu.memory_space<vmem>>, vector<2x24x128xf32>,
    %c0_2 = arith.constant 0 : index
    %c0_3 = arith.constant 0 : index
    %c0_4 = arith.constant 0 : index
    %2 = vector.load %arg1[%c0_2, %c0_3, %c0_4] : memref<2x16x10xf32, #tpu.memory_space<vmem>>, vector<2x16x10xf32>
    %c0_5 = arith.constant 0 : index
    %c8 = arith.constant 8 : index
    %c0_6 = arith.constant 0 : index
    %3 = vector.load %arg9[%c0_5, %c8, %c0_6] : memref<2x24x128xf32, #tpu.memory_space<vmem>>, vector<2x16x10xf32>
    tpu.vector_store %arg9[%c0_5, %c8, %c0_6], %2 {strides = array<i32>} : memref<2x24x128xf32, #tpu.memory_space<vmem>>, vector<2x16x10xf32>,
    %c0_7 = arith.constant 0 : index
    %c8_8 = arith.constant 8 : index
    %c0_9 = arith.constant 0 : index
    %4 = vector.load %arg9[%c0_7, %c8_8, %c0_9] : memref<2x24x128xf32, #tpu.memory_space<vmem>>, vector<2x16x128xf32>
    %5 = vector.shape_cast %4 : vector<2x16x128xf32> to vector<32x128xf32>
    %c0_10 = arith.constant 0 : index
    %c0_11 = arith.constant 0 : index
    %c0_12 = arith.constant 0 : index
    %6 = vector.load %arg2[%c0_10, %c0_11, %c0_12] : memref<10x256x128xbf16, #tpu.memory_space<vmem>>, vector<1x256x128xbf16>
    %7 = vector.shape_cast %6 : vector<1x256x128xbf16> to vector<256x128xbf16>
    %c0_13 = arith.constant 0 : index
    %c0_14 = arith.constant 0 : index
    %c0_15 = arith.constant 0 : index
    %8 = vector.load %arg3[%c0_13, %c0_14, %c0_15] : memref<10x1x128xf32, #tpu.memory_space<vmem>>, vector<1x1x128xf32>
    %9 = vector.shape_cast %8 : vector<1x1x128xf32> to vector<1x128xf32>
    %10 = vector.shape_cast %5 : vector<32x128xf32> to vector<2x16x128xf32>
    %c0_16 = arith.constant 0 : index
    %c8_17 = arith.constant 8 : index
    %c0_18 = arith.constant 0 : index
    %11 = vector.load %arg9[%c0_16, %c8_17, %c0_18] : memref<2x24x128xf32, #tpu.memory_space<vmem>>, vector<2x16x128xf32>
    tpu.vector_store %arg9[%c0_16, %c8_17, %c0_18], %10 {strides = array<i32>} : memref<2x24x128xf32, #tpu.memory_space<vmem>>, vector<2x16x128xf32>,
    %c0_19 = arith.constant 0 : index
    %c7 = arith.constant 7 : index
    %c0_20 = arith.constant 0 : index
    %12 = vector.load %arg9[%c0_19, %c7, %c0_20] : memref<2x24x128xf32, #tpu.memory_space<vmem>>, vector<2x16x128xf32>
    %13 = vector.shape_cast %12 : vector<2x16x128xf32> to vector<32x128xf32>
    %14 = arith.truncf %13 : vector<32x128xf32> to vector<32x128xbf16>
    %15 = arith.truncf %5 : vector<32x128xf32> to vector<32x128xbf16>
    %16 = tpu.concatenate %14, %15 in 1 : vector<32x128xbf16>, vector<32x128xbf16> -> vector<32x256xbf16>
    %cst_21 = arith.constant dense<0.000000e+00> : vector<32x128xf32>
    %17 = tpu.matmul %16, %7, %cst_21 {dimension_numbers = #tpu.dot_dimension_numbers<[1], [0], [0], [1], [0, 0, 1, 1], [], []>} : vector<32x256xbf16>, vector<256x128xbf16>, vector<32x128xf32> -> vector<32x128xf32>
    %18 = vector.broadcast %9 : vector<1x128xf32> to vector<32x128xf32>
    %19 = arith.addf %17, %18 : vector<32x128xf32>
    %cst_22 = arith.constant 0.000000e+00 : f32
    %20 = vector.broadcast %cst_22 : f32 to vector<32x128xf32>
    %21 = arith.maximumf %19, %20 : vector<32x128xf32>
    %c1 = arith.constant 1 : index
    %c0_23 = arith.constant 0 : index
    %c0_24 = arith.constant 0 : index
    %22 = vector.load %arg2[%c1, %c0_23, %c0_24] : memref<10x256x128xbf16, #tpu.memory_space<vmem>>, vector<1x256x128xbf16>
    %23 = vector.shape_cast %22 : vector<1x256x128xbf16> to vector<256x128xbf16>
    %c1_25 = arith.constant 1 : index
    %c0_26 = arith.constant 0 : index
    %c0_27 = arith.constant 0 : index
    %24 = vector.load %arg3[%c1_25, %c0_26, %c0_27] : memref<10x1x128xf32, #tpu.memory_space<vmem>>, vector<1x1x128xf32>
    %25 = vector.shape_cast %24 : vector<1x1x128xf32> to vector<1x128xf32>
    %26 = vector.shape_cast %21 : vector<32x128xf32> to vector<2x16x128xf32>
    %c0_28 = arith.constant 0 : index
    %c8_29 = arith.constant 8 : index
    %c0_30 = arith.constant 0 : index
    %27 = vector.load %arg9[%c0_28, %c8_29, %c0_30] : memref<2x24x128xf32, #tpu.memory_space<vmem>>, vector<2x16x128xf32>
    tpu.vector_store %arg9[%c0_28, %c8_29, %c0_30], %26 {strides = array<i32>} : memref<2x24x128xf32, #tpu.memory_space<vmem>>, vector<2x16x128xf32>,
    %c0_31 = arith.constant 0 : index
    %c7_32 = arith.constant 7 : index
    %c0_33 = arith.constant 0 : index
    %28 = vector.load %arg9[%c0_31, %c7_32, %c0_33] : memref<2x24x128xf32, #tpu.memory_space<vmem>>, vector<2x16x128xf32>
    %29 = vector.shape_cast %28 : vector<2x16x128xf32> to vector<32x128xf32>
    %30 = arith.truncf %29 : vector<32x128xf32> to vector<32x128xbf16>
    %31 = arith.truncf %21 : vector<32x128xf32> to vector<32x128xbf16>
    %32 = tpu.concatenate %30, %31 in 1 : vector<32x128xbf16>, vector<32x128xbf16> -> vector<32x256xbf16>
    %cst_34 = arith.constant dense<0.000000e+00> : vector<32x128xf32>
    %33 = tpu.matmul %32, %23, %cst_34 {dimension_numbers = #tpu.dot_dimension_numbers<[1], [0], [0], [1], [0, 0, 1, 1], [], []>} : vector<32x256xbf16>, vector<256x128xbf16>, vector<32x128xf32> -> vector<32x128xf32>
    %34 = vector.broadcast %25 : vector<1x128xf32> to vector<32x128xf32>
    %35 = arith.addf %33, %34 : vector<32x128xf32>
    %cst_35 = arith.constant 0.000000e+00 : f32
    %36 = vector.broadcast %cst_35 : f32 to vector<32x128xf32>
    %37 = arith.maximumf %35, %36 : vector<32x128xf32>
    %38 = arith.truncf %5 : vector<32x128xf32> to vector<32x128xbf16>
    %c0_36 = arith.constant 0 : index
    %c0_37 = arith.constant 0 : index
    %39 = vector.load %arg4[%c0_36, %c0_37] : memref<128x128xbf16, #tpu.memory_space<vmem>>, vector<128x128xbf16>
    %cst_38 = arith.constant dense<0.000000e+00> : vector<32x128xf32>
    %40 = tpu.matmul %38, %39, %cst_38 {dimension_numbers = #tpu.dot_dimension_numbers<[1], [0], [0], [1], [0, 0, 1, 1], [], []>} : vector<32x128xbf16>, vector<128x128xbf16>, vector<32x128xf32> -> vector<32x128xf32>
    %c0_39 = arith.constant 0 : index
    %c0_40 = arith.constant 0 : index
    %41 = vector.load %arg5[%c0_39, %c0_40] : memref<1x128xf32, #tpu.memory_space<vmem>>, vector<1x128xf32>
    %42 = vector.broadcast %41 : vector<1x128xf32> to vector<32x128xf32>
    %43 = arith.addf %40, %42 : vector<32x128xf32>
    %44 = arith.addf %37, %43 : vector<32x128xf32>
    %cst_41 = arith.constant 0.000000e+00 : f32
    %45 = vector.broadcast %cst_41 : f32 to vector<32x128xf32>
    %46 = arith.maximumf %44, %45 : vector<32x128xf32>
    %c2 = arith.constant 2 : index
    %c0_42 = arith.constant 0 : index
    %c0_43 = arith.constant 0 : index
    %47 = vector.load %arg2[%c2, %c0_42, %c0_43] : memref<10x256x128xbf16, #tpu.memory_space<vmem>>, vector<1x256x128xbf16>
    %48 = vector.shape_cast %47 : vector<1x256x128xbf16> to vector<256x128xbf16>
    %c2_44 = arith.constant 2 : index
    %c0_45 = arith.constant 0 : index
    %c0_46 = arith.constant 0 : index
    %49 = vector.load %arg3[%c2_44, %c0_45, %c0_46] : memref<10x1x128xf32, #tpu.memory_space<vmem>>, vector<1x1x128xf32>
    %50 = vector.shape_cast %49 : vector<1x1x128xf32> to vector<1x128xf32>
    %51 = vector.shape_cast %46 : vector<32x128xf32> to vector<2x16x128xf32>
    %c0_47 = arith.constant 0 : index
    %c8_48 = arith.constant 8 : index
    %c0_49 = arith.constant 0 : index
    %52 = vector.load %arg9[%c0_47, %c8_48, %c0_49] : memref<2x24x128xf32, #tpu.memory_space<vmem>>, vector<2x16x128xf32>
    tpu.vector_store %arg9[%c0_47, %c8_48, %c0_49], %51 {strides = array<i32>} : memref<2x24x128xf32, #tpu.memory_space<vmem>>, vector<2x16x128xf32>,
    %c0_50 = arith.constant 0 : index
    %c6 = arith.constant 6 : index
    %c0_51 = arith.constant 0 : index
    %53 = vector.load %arg9[%c0_50, %c6, %c0_51] : memref<2x24x128xf32, #tpu.memory_space<vmem>>, vector<2x16x128xf32>
    %54 = vector.shape_cast %53 : vector<2x16x128xf32> to vector<32x128xf32>
    %55 = arith.truncf %54 : vector<32x128xf32> to vector<32x128xbf16>
    %56 = arith.truncf %46 : vector<32x128xf32> to vector<32x128xbf16>
    %57 = tpu.concatenate %55, %56 in 1 : vector<32x128xbf16>, vector<32x128xbf16> -> vector<32x256xbf16>
    %cst_52 = arith.constant dense<0.000000e+00> : vector<32x128xf32>
    %58 = tpu.matmul %57, %48, %cst_52 {dimension_numbers = #tpu.dot_dimension_numbers<[1], [0], [0], [1], [0, 0, 1, 1], [], []>} : vector<32x256xbf16>, vector<256x128xbf16>, vector<32x128xf32> -> vector<32x128xf32>
    %59 = vector.broadcast %50 : vector<1x128xf32> to vector<32x128xf32>
    %60 = arith.addf %58, %59 : vector<32x128xf32>
    %cst_53 = arith.constant 0.000000e+00 : f32
    %61 = vector.broadcast %cst_53 : f32 to vector<32x128xf32>
    %62 = arith.maximumf %60, %61 : vector<32x128xf32>
    %c3 = arith.constant 3 : index
    %c0_54 = arith.constant 0 : index
    %c0_55 = arith.constant 0 : index
    %63 = vector.load %arg2[%c3, %c0_54, %c0_55] : memref<10x256x128xbf16, #tpu.memory_space<vmem>>, vector<1x256x128xbf16>
    %64 = vector.shape_cast %63 : vector<1x256x128xbf16> to vector<256x128xbf16>
    %c3_56 = arith.constant 3 : index
    %c0_57 = arith.constant 0 : index
    %c0_58 = arith.constant 0 : index
    %65 = vector.load %arg3[%c3_56, %c0_57, %c0_58] : memref<10x1x128xf32, #tpu.memory_space<vmem>>, vector<1x1x128xf32>
    %66 = vector.shape_cast %65 : vector<1x1x128xf32> to vector<1x128xf32>
    %67 = vector.shape_cast %62 : vector<32x128xf32> to vector<2x16x128xf32>
    %c0_59 = arith.constant 0 : index
    %c8_60 = arith.constant 8 : index
    %c0_61 = arith.constant 0 : index
    %68 = vector.load %arg9[%c0_59, %c8_60, %c0_61] : memref<2x24x128xf32, #tpu.memory_space<vmem>>, vector<2x16x128xf32>
    tpu.vector_store %arg9[%c0_59, %c8_60, %c0_61], %67 {strides = array<i32>} : memref<2x24x128xf32, #tpu.memory_space<vmem>>, vector<2x16x128xf32>,
    %c0_62 = arith.constant 0 : index
    %c6_63 = arith.constant 6 : index
    %c0_64 = arith.constant 0 : index
    %69 = vector.load %arg9[%c0_62, %c6_63, %c0_64] : memref<2x24x128xf32, #tpu.memory_space<vmem>>, vector<2x16x128xf32>
    %70 = vector.shape_cast %69 : vector<2x16x128xf32> to vector<32x128xf32>
    %71 = arith.truncf %70 : vector<32x128xf32> to vector<32x128xbf16>
    %72 = arith.truncf %62 : vector<32x128xf32> to vector<32x128xbf16>
    %73 = tpu.concatenate %71, %72 in 1 : vector<32x128xbf16>, vector<32x128xbf16> -> vector<32x256xbf16>
    %cst_65 = arith.constant dense<0.000000e+00> : vector<32x128xf32>
    %74 = tpu.matmul %73, %64, %cst_65 {dimension_numbers = #tpu.dot_dimension_numbers<[1], [0], [0], [1], [0, 0, 1, 1], [], []>} : vector<32x256xbf16>, vector<256x128xbf16>, vector<32x128xf32> -> vector<32x128xf32>
    %75 = vector.broadcast %66 : vector<1x128xf32> to vector<32x128xf32>
    %76 = arith.addf %74, %75 : vector<32x128xf32>
    %cst_66 = arith.constant 0.000000e+00 : f32
    %77 = vector.broadcast %cst_66 : f32 to vector<32x128xf32>
    %78 = arith.maximumf %76, %77 : vector<32x128xf32>
    %79 = arith.addf %78, %46 : vector<32x128xf32>
    %cst_67 = arith.constant 0.000000e+00 : f32
    %80 = vector.broadcast %cst_67 : f32 to vector<32x128xf32>
    %81 = arith.maximumf %79, %80 : vector<32x128xf32>
    %c4 = arith.constant 4 : index
    %c0_68 = arith.constant 0 : index
    %c0_69 = arith.constant 0 : index
    %82 = vector.load %arg2[%c4, %c0_68, %c0_69] : memref<10x256x128xbf16, #tpu.memory_space<vmem>>, vector<1x256x128xbf16>
    %83 = vector.shape_cast %82 : vector<1x256x128xbf16> to vector<256x128xbf16>
    %c4_70 = arith.constant 4 : index
    %c0_71 = arith.constant 0 : index
    %c0_72 = arith.constant 0 : index
    %84 = vector.load %arg3[%c4_70, %c0_71, %c0_72] : memref<10x1x128xf32, #tpu.memory_space<vmem>>, vector<1x1x128xf32>
    %85 = vector.shape_cast %84 : vector<1x1x128xf32> to vector<1x128xf32>
    %86 = vector.shape_cast %81 : vector<32x128xf32> to vector<2x16x128xf32>
    %c0_73 = arith.constant 0 : index
    %c8_74 = arith.constant 8 : index
    %c0_75 = arith.constant 0 : index
    %87 = vector.load %arg9[%c0_73, %c8_74, %c0_75] : memref<2x24x128xf32, #tpu.memory_space<vmem>>, vector<2x16x128xf32>
    tpu.vector_store %arg9[%c0_73, %c8_74, %c0_75], %86 {strides = array<i32>} : memref<2x24x128xf32, #tpu.memory_space<vmem>>, vector<2x16x128xf32>,
    %c0_76 = arith.constant 0 : index
    %c4_77 = arith.constant 4 : index
    %c0_78 = arith.constant 0 : index
    %88 = vector.load %arg9[%c0_76, %c4_77, %c0_78] : memref<2x24x128xf32, #tpu.memory_space<vmem>>, vector<2x16x128xf32>
    %89 = vector.shape_cast %88 : vector<2x16x128xf32> to vector<32x128xf32>
    %90 = arith.truncf %89 : vector<32x128xf32> to vector<32x128xbf16>
    %91 = arith.truncf %81 : vector<32x128xf32> to vector<32x128xbf16>
    %92 = tpu.concatenate %90, %91 in 1 : vector<32x128xbf16>, vector<32x128xbf16> -> vector<32x256xbf16>
    %cst_79 = arith.constant dense<0.000000e+00> : vector<32x128xf32>
    %93 = tpu.matmul %92, %83, %cst_79 {dimension_numbers = #tpu.dot_dimension_numbers<[1], [0], [0], [1], [0, 0, 1, 1], [], []>} : vector<32x256xbf16>, vector<256x128xbf16>, vector<32x128xf32> -> vector<32x128xf32>
    %94 = vector.broadcast %85 : vector<1x128xf32> to vector<32x128xf32>
    %95 = arith.addf %93, %94 : vector<32x128xf32>
    %cst_80 = arith.constant 0.000000e+00 : f32
    %96 = vector.broadcast %cst_80 : f32 to vector<32x128xf32>
    %97 = arith.maximumf %95, %96 : vector<32x128xf32>
    %c5 = arith.constant 5 : index
    %c0_81 = arith.constant 0 : index
    %c0_82 = arith.constant 0 : index
    %98 = vector.load %arg2[%c5, %c0_81, %c0_82] : memref<10x256x128xbf16, #tpu.memory_space<vmem>>, vector<1x256x128xbf16>
    %99 = vector.shape_cast %98 : vector<1x256x128xbf16> to vector<256x128xbf16>
    %c5_83 = arith.constant 5 : index
    %c0_84 = arith.constant 0 : index
    %c0_85 = arith.constant 0 : index
    %100 = vector.load %arg3[%c5_83, %c0_84, %c0_85] : memref<10x1x128xf32, #tpu.memory_space<vmem>>, vector<1x1x128xf32>
    %101 = vector.shape_cast %100 : vector<1x1x128xf32> to vector<1x128xf32>
    %102 = vector.shape_cast %97 : vector<32x128xf32> to vector<2x16x128xf32>
    %c0_86 = arith.constant 0 : index
    %c8_87 = arith.constant 8 : index
    %c0_88 = arith.constant 0 : index
    %103 = vector.load %arg9[%c0_86, %c8_87, %c0_88] : memref<2x24x128xf32, #tpu.memory_space<vmem>>, vector<2x16x128xf32>
    tpu.vector_store %arg9[%c0_86, %c8_87, %c0_88], %102 {strides = array<i32>} : memref<2x24x128xf32, #tpu.memory_space<vmem>>, vector<2x16x128xf32>,
    %c0_89 = arith.constant 0 : index
    %c4_90 = arith.constant 4 : index
    %c0_91 = arith.constant 0 : index
    %104 = vector.load %arg9[%c0_89, %c4_90, %c0_91] : memref<2x24x128xf32, #tpu.memory_space<vmem>>, vector<2x16x128xf32>
    %105 = vector.shape_cast %104 : vector<2x16x128xf32> to vector<32x128xf32>
    %106 = arith.truncf %105 : vector<32x128xf32> to vector<32x128xbf16>
    %107 = arith.truncf %97 : vector<32x128xf32> to vector<32x128xbf16>
    %108 = tpu.concatenate %106, %107 in 1 : vector<32x128xbf16>, vector<32x128xbf16> -> vector<32x256xbf16>
    %cst_92 = arith.constant dense<0.000000e+00> : vector<32x128xf32>
    %109 = tpu.matmul %108, %99, %cst_92 {dimension_numbers = #tpu.dot_dimension_numbers<[1], [0], [0], [1], [0, 0, 1, 1], [], []>} : vector<32x256xbf16>, vector<256x128xbf16>, vector<32x128xf32> -> vector<32x128xf32>
    %110 = vector.broadcast %101 : vector<1x128xf32> to vector<32x128xf32>
    %111 = arith.addf %109, %110 : vector<32x128xf32>
    %cst_93 = arith.constant 0.000000e+00 : f32
    %112 = vector.broadcast %cst_93 : f32 to vector<32x128xf32>
    %113 = arith.maximumf %111, %112 : vector<32x128xf32>
    %114 = arith.addf %113, %81 : vector<32x128xf32>
    %cst_94 = arith.constant 0.000000e+00 : f32
    %115 = vector.broadcast %cst_94 : f32 to vector<32x128xf32>
    %116 = arith.maximumf %114, %115 : vector<32x128xf32>
    %c6_95 = arith.constant 6 : index
    %c0_96 = arith.constant 0 : index
    %c0_97 = arith.constant 0 : index
    %117 = vector.load %arg2[%c6_95, %c0_96, %c0_97] : memref<10x256x128xbf16, #tpu.memory_space<vmem>>, vector<1x256x128xbf16>
    %118 = vector.shape_cast %117 : vector<1x256x128xbf16> to vector<256x128xbf16>
    %c6_98 = arith.constant 6 : index
    %c0_99 = arith.constant 0 : index
    %c0_100 = arith.constant 0 : index
    %119 = vector.load %arg3[%c6_98, %c0_99, %c0_100] : memref<10x1x128xf32, #tpu.memory_space<vmem>>, vector<1x1x128xf32>
    %120 = vector.shape_cast %119 : vector<1x1x128xf32> to vector<1x128xf32>
    %121 = vector.shape_cast %116 : vector<32x128xf32> to vector<2x16x128xf32>
    %c0_101 = arith.constant 0 : index
    %c8_102 = arith.constant 8 : index
    %c0_103 = arith.constant 0 : index
    %122 = vector.load %arg9[%c0_101, %c8_102, %c0_103] : memref<2x24x128xf32, #tpu.memory_space<vmem>>, vector<2x16x128xf32>
    tpu.vector_store %arg9[%c0_101, %c8_102, %c0_103], %121 {strides = array<i32>} : memref<2x24x128xf32, #tpu.memory_space<vmem>>, vector<2x16x128xf32>,
    %c0_104 = arith.constant 0 : index
    %c0_105 = arith.constant 0 : index
    %c0_106 = arith.constant 0 : index
    %123 = vector.load %arg9[%c0_104, %c0_105, %c0_106] : memref<2x24x128xf32, #tpu.memory_space<vmem>>, vector<2x16x128xf32>
    %124 = vector.shape_cast %123 : vector<2x16x128xf32> to vector<32x128xf32>
    %125 = arith.truncf %124 : vector<32x128xf32> to vector<32x128xbf16>
    %126 = arith.truncf %116 : vector<32x128xf32> to vector<32x128xbf16>
    %127 = tpu.concatenate %125, %126 in 1 : vector<32x128xbf16>, vector<32x128xbf16> -> vector<32x256xbf16>
    %cst_107 = arith.constant dense<0.000000e+00> : vector<32x128xf32>
    %128 = tpu.matmul %127, %118, %cst_107 {dimension_numbers = #tpu.dot_dimension_numbers<[1], [0], [0], [1], [0, 0, 1, 1], [], []>} : vector<32x256xbf16>, vector<256x128xbf16>, vector<32x128xf32> -> vector<32x128xf32>
    %129 = vector.broadcast %120 : vector<1x128xf32> to vector<32x128xf32>
    %130 = arith.addf %128, %129 : vector<32x128xf32>
    %cst_108 = arith.constant 0.000000e+00 : f32
    %131 = vector.broadcast %cst_108 : f32 to vector<32x128xf32>
    %132 = arith.maximumf %130, %131 : vector<32x128xf32>
    %c7_109 = arith.constant 7 : index
    %c0_110 = arith.constant 0 : index
    %c0_111 = arith.constant 0 : index
    %133 = vector.load %arg2[%c7_109, %c0_110, %c0_111] : memref<10x256x128xbf16, #tpu.memory_space<vmem>>, vector<1x256x128xbf16>
    %134 = vector.shape_cast %133 : vector<1x256x128xbf16> to vector<256x128xbf16>
    %c7_112 = arith.constant 7 : index
    %c0_113 = arith.constant 0 : index
    %c0_114 = arith.constant 0 : index
    %135 = vector.load %arg3[%c7_112, %c0_113, %c0_114] : memref<10x1x128xf32, #tpu.memory_space<vmem>>, vector<1x1x128xf32>
    %136 = vector.shape_cast %135 : vector<1x1x128xf32> to vector<1x128xf32>
    %137 = vector.shape_cast %132 : vector<32x128xf32> to vector<2x16x128xf32>
    %c0_115 = arith.constant 0 : index
    %c8_116 = arith.constant 8 : index
    %c0_117 = arith.constant 0 : index
    %138 = vector.load %arg9[%c0_115, %c8_116, %c0_117] : memref<2x24x128xf32, #tpu.memory_space<vmem>>, vector<2x16x128xf32>
    tpu.vector_store %arg9[%c0_115, %c8_116, %c0_117], %137 {strides = array<i32>} : memref<2x24x128xf32, #tpu.memory_space<vmem>>, vector<2x16x128xf32>,
    %c0_118 = arith.constant 0 : index
    %c0_119 = arith.constant 0 : index
    %c0_120 = arith.constant 0 : index
    %139 = vector.load %arg9[%c0_118, %c0_119, %c0_120] : memref<2x24x128xf32, #tpu.memory_space<vmem>>, vector<2x16x128xf32>
    %140 = vector.shape_cast %139 : vector<2x16x128xf32> to vector<32x128xf32>
    %141 = arith.truncf %140 : vector<32x128xf32> to vector<32x128xbf16>
    %142 = arith.truncf %132 : vector<32x128xf32> to vector<32x128xbf16>
    %143 = tpu.concatenate %141, %142 in 1 : vector<32x128xbf16>, vector<32x128xbf16> -> vector<32x256xbf16>
    %cst_121 = arith.constant dense<0.000000e+00> : vector<32x128xf32>
    %144 = tpu.matmul %143, %134, %cst_121 {dimension_numbers = #tpu.dot_dimension_numbers<[1], [0], [0], [1], [0, 0, 1, 1], [], []>} : vector<32x256xbf16>, vector<256x128xbf16>, vector<32x128xf32> -> vector<32x128xf32>
    %145 = vector.broadcast %136 : vector<1x128xf32> to vector<32x128xf32>
    %146 = arith.addf %144, %145 : vector<32x128xf32>
    %cst_122 = arith.constant 0.000000e+00 : f32
    %147 = vector.broadcast %cst_122 : f32 to vector<32x128xf32>
    %148 = arith.maximumf %146, %147 : vector<32x128xf32>
    %149 = arith.addf %148, %116 : vector<32x128xf32>
    %cst_123 = arith.constant 0.000000e+00 : f32
    %150 = vector.broadcast %cst_123 : f32 to vector<32x128xf32>
    %151 = arith.maximumf %149, %150 : vector<32x128xf32>
    %c8_124 = arith.constant 8 : index
    %c0_125 = arith.constant 0 : index
    %c0_126 = arith.constant 0 : index
    %152 = vector.load %arg2[%c8_124, %c0_125, %c0_126] : memref<10x256x128xbf16, #tpu.memory_space<vmem>>, vector<1x256x128xbf16>
    %153 = vector.shape_cast %152 : vector<1x256x128xbf16> to vector<256x128xbf16>
    %c8_127 = arith.constant 8 : index
    %c0_128 = arith.constant 0 : index
    %c0_129 = arith.constant 0 : index
    %154 = vector.load %arg3[%c8_127, %c0_128, %c0_129] : memref<10x1x128xf32, #tpu.memory_space<vmem>>, vector<1x1x128xf32>
    %155 = vector.shape_cast %154 : vector<1x1x128xf32> to vector<1x128xf32>
    %cst_130 = arith.constant 0.000000e+00 : bf16
    %156 = vector.broadcast %cst_130 : bf16 to vector<32x128xbf16>
    %157 = arith.truncf %151 : vector<32x128xf32> to vector<32x128xbf16>
    %158 = tpu.concatenate %156, %157 in 1 : vector<32x128xbf16>, vector<32x128xbf16> -> vector<32x256xbf16>
    %cst_131 = arith.constant dense<0.000000e+00> : vector<32x128xf32>
    %159 = tpu.matmul %158, %153, %cst_131 {dimension_numbers = #tpu.dot_dimension_numbers<[1], [0], [0], [1], [0, 0, 1, 1], [], []>} : vector<32x256xbf16>, vector<256x128xbf16>, vector<32x128xf32> -> vector<32x128xf32>
    %160 = vector.broadcast %155 : vector<1x128xf32> to vector<32x128xf32>
    %161 = arith.addf %159, %160 : vector<32x128xf32>
    %cst_132 = arith.constant 0.000000e+00 : f32
    %162 = vector.broadcast %cst_132 : f32 to vector<32x128xf32>
    %163 = arith.maximumf %161, %162 : vector<32x128xf32>
    %c9 = arith.constant 9 : index
    %c0_133 = arith.constant 0 : index
    %c0_134 = arith.constant 0 : index
    %164 = vector.load %arg2[%c9, %c0_133, %c0_134] : memref<10x256x128xbf16, #tpu.memory_space<vmem>>, vector<1x256x128xbf16>
    %165 = vector.shape_cast %164 : vector<1x256x128xbf16> to vector<256x128xbf16>
    %c9_135 = arith.constant 9 : index
    %c0_136 = arith.constant 0 : index
    %c0_137 = arith.constant 0 : index
    %166 = vector.load %arg3[%c9_135, %c0_136, %c0_137] : memref<10x1x128xf32, #tpu.memory_space<vmem>>, vector<1x1x128xf32>
    %167 = vector.shape_cast %166 : vector<1x1x128xf32> to vector<1x128xf32>
    %cst_138 = arith.constant 0.000000e+00 : bf16
    %168 = vector.broadcast %cst_138 : bf16 to vector<32x128xbf16>
    %169 = arith.truncf %163 : vector<32x128xf32> to vector<32x128xbf16>
    %170 = tpu.concatenate %168, %169 in 1 : vector<32x128xbf16>, vector<32x128xbf16> -> vector<32x256xbf16>
    %cst_139 = arith.constant dense<0.000000e+00> : vector<32x128xf32>
    %171 = tpu.matmul %170, %165, %cst_139 {dimension_numbers = #tpu.dot_dimension_numbers<[1], [0], [0], [1], [0, 0, 1, 1], [], []>} : vector<32x256xbf16>, vector<256x128xbf16>, vector<32x128xf32> -> vector<32x128xf32>
    %172 = vector.broadcast %167 : vector<1x128xf32> to vector<32x128xf32>
    %173 = arith.addf %171, %172 : vector<32x128xf32>
    %cst_140 = arith.constant 0.000000e+00 : f32
    %174 = vector.broadcast %cst_140 : f32 to vector<32x128xf32>
    %175 = arith.maximumf %173, %174 : vector<32x128xf32>
    %176 = arith.addf %175, %151 : vector<32x128xf32>
    %cst_141 = arith.constant 0.000000e+00 : f32
    %177 = vector.broadcast %cst_141 : f32 to vector<32x128xf32>
    %178 = arith.maximumf %176, %177 : vector<32x128xf32>
    %179 = math.tanh %178 : vector<32x128xf32>
    %180 = arith.truncf %179 : vector<32x128xf32> to vector<32x128xbf16>
    %c0_142 = arith.constant 0 : index
    %c0_143 = arith.constant 0 : index
    %181 = vector.load %arg6[%c0_142, %c0_143] : memref<128x128xbf16, #tpu.memory_space<vmem>>, vector<128x128xbf16>
    %cst_144 = arith.constant dense<0.000000e+00> : vector<32x128xf32>
    %182 = tpu.matmul %180, %181, %cst_144 {dimension_numbers = #tpu.dot_dimension_numbers<[1], [0], [0], [1], [0, 0, 1, 1], [], []>} : vector<32x128xbf16>, vector<128x128xbf16>, vector<32x128xf32> -> vector<32x128xf32>
    %c0_145 = arith.constant 0 : index
    %c0_146 = arith.constant 0 : index
    %183 = vector.load %arg7[%c0_145, %c0_146] : memref<1x128xf32, #tpu.memory_space<vmem>>, vector<1x128xf32>
    %184 = vector.broadcast %183 : vector<1x128xf32> to vector<32x128xf32>
    %185 = arith.addf %182, %184 : vector<32x128xf32>
    %186 = vector.shape_cast %185 : vector<32x128xf32> to vector<2x16x128xf32>
    %187 = vector.extract_strided_slice %186 {offsets = [0, 0, 0], sizes = [2, 16, 12], strides = [1, 1, 1]} : vector<2x16x128xf32> to vector<2x16x12xf32>
    %c0_147 = arith.constant 0 : index
    %c0_148 = arith.constant 0 : index
    %c0_149 = arith.constant 0 : index
    %188 = vector.load %arg8[%c0_147, %c0_148, %c0_149] : memref<2x16x12xf32, #tpu.memory_space<vmem>>, vector<2x16x12xf32>
    tpu.vector_store %arg8[%c0_147, %c0_148, %c0_149], %187 {strides = array<i32>} : memref<2x16x12xf32, #tpu.memory_space<vmem>>, vector<2x16x12xf32>,
    return
  }
  func.func @transform_0(%arg0: i32) -> (i32, i32, i32) {
    %c0_i32 = arith.constant 0 : i32
    %c0_i32_0 = arith.constant 0 : i32
    %c0_i32_1 = arith.constant 0 : i32
    return %arg0, %c0_i32, %c0_i32_0 : i32, i32, i32
  }
  func.func @transform_1(%arg0: i32) -> (i32, i32, i32) {
    %c0_i32 = arith.constant 0 : i32
    %c0_i32_0 = arith.constant 0 : i32
    %c0_i32_1 = arith.constant 0 : i32
    %c0_i32_2 = arith.constant 0 : i32
    return %c0_i32, %c0_i32_0, %c0_i32_1 : i32, i32, i32
  }
  func.func @transform_2(%arg0: i32) -> (i32, i32, i32) {
    %c0_i32 = arith.constant 0 : i32
    %c0_i32_0 = arith.constant 0 : i32
    %c0_i32_1 = arith.constant 0 : i32
    %c0_i32_2 = arith.constant 0 : i32
    return %c0_i32, %c0_i32_0, %c0_i32_1 : i32, i32, i32
  }
  func.func @transform_3(%arg0: i32) -> (i32, i32) {
    %c0_i32 = arith.constant 0 : i32
    %c0_i32_0 = arith.constant 0 : i32
    %c0_i32_1 = arith.constant 0 : i32
    return %c0_i32, %c0_i32_0 : i32, i32
  }
  func.func @transform_4(%arg0: i32) -> (i32, i32) {
    %c0_i32 = arith.constant 0 : i32
    %c0_i32_0 = arith.constant 0 : i32
    %c0_i32_1 = arith.constant 0 : i32
    return %c0_i32, %c0_i32_0 : i32, i32
  }
  func.func @transform_5(%arg0: i32) -> (i32, i32) {
    %c0_i32 = arith.constant 0 : i32
    %c0_i32_0 = arith.constant 0 : i32
    %c0_i32_1 = arith.constant 0 : i32
    return %c0_i32, %c0_i32_0 : i32, i32
  }
  func.func @transform_6(%arg0: i32) -> (i32, i32) {
    %c0_i32 = arith.constant 0 : i32
    %c0_i32_0 = arith.constant 0 : i32
    %c0_i32_1 = arith.constant 0 : i32
    return %c0_i32, %c0_i32_0 : i32, i32
  }
  func.func @transform_7(%arg0: i32) -> (i32, i32, i32) {
    %c0_i32 = arith.constant 0 : i32
    %c0_i32_0 = arith.constant 0 : i32
    %c0_i32_1 = arith.constant 0 : i32
    return %arg0, %c0_i32, %c0_i32_0 : i32, i32, i32
  }
}

</mosaic_0001>

<llo_original>
// kernel: tpu_custom_call.1
$region0: #{tpu_custom_call.1}
  #allocation0 [shape = 'u32[]', space=smem, size = 0x4, offset = 0x4, fixed_abs, tag = 'smem constant byte address 0x4 - core index']
  #allocation1 [shape = 'u32[72,128]{1,0:T(1,128)}', space=vmem, size = 0x9000, scoped, tag = 'internal scratch']
  #allocation2 [shape = 'f32[2,24,128]{2,1,0:T(8,128)}', space=vmem, size = 0x6000, scoped, tag = 'scratch operand']
  %s0 = inlined_call_operand.vmem [shape: f32[4,16,10], index: 0, kind: input, shape index: {}]
  %s1 = inlined_call_operand.hbm [shape: bf16[10,256,128], index: 1, kind: input, shape index: {}]
  %s2 = inlined_call_operand.vmem [shape: f32[10,1,128], index: 2, kind: input, shape index: {}]
  %s3 = inlined_call_operand.vmem [shape: bf16[128,128], index: 3, kind: input, shape index: {}]
  %s4 = inlined_call_operand.vmem [shape: f32[1,128], index: 4, kind: input, shape index: {}]
  %s5 = inlined_call_operand.hbm [shape: bf16[128,128], index: 5, kind: input, shape index: {}]
  %s6 = inlined_call_operand.vmem [shape: f32[1,128], index: 6, kind: input, shape index: {}]
  %s7 = inlined_call_operand.vmem [shape: f32[4,16,12], index: 7, kind: output, shape index: {}]
  %s8 = sld [smem:[#allocation0]]
  $region69: #{tpu_custom_call.1} parent=0
    _
  %s10 = ssub.s32 1, %s8
  %s11 = scalar_select 0, %s10, %s8
  $region1: #{tpu_custom_call.1} parent=0
    #allocation3 [shape = 'u8[655360]{0}', space=vmem, size = 0xa0000, scoped, tag = 'input window, operand 1, single buffered']
    #allocation4 [shape = 's32[2]{0}', space=sflag, size = 0x8, scoped, tag = 'scoped memory for tpu_custom_call.1']
    #allocation5 [shape = 'u8[32768]{0}', space=vmem, size = 0x8000, scoped, tag = 'input window, operand 5, single buffered']
    #allocation6 [shape = 's32[1]{0}', space=sflag, size = 0x4, scoped, tag = 'scoped memory for tpu_custom_call.1']
    %12 = vsyncpa [#allocation4], 0
    %13 = vsyncpa [#allocation6], 0
    loop: start=0, step=1, limit=4
    $region2: #{tpu_custom_call.1} parent=1 // loop_pre_header
      _
    $region3: #{tpu_custom_call.1} parent=1 // loop_header
      %s15 = sphi 0, %s19
      %p16 = scmp.ge.s32.totalorder %s15, 4
      %s25 = sphi 0, %s27
      %s28 = sphi 0, %s25
      %s29 = sphi 0, %s28
      %s45 = sphi 0, %s29
      %s49 = sphi 0, %s49
      %s51 = sphi 0, %s49
      %s52 = sphi 0, %s51
      %s66 = sphi 0, %s52
      %s70 = sphi 0, %s70
      %s72 = sphi 0, %s70
      %s73 = sphi 0, %s72
      %s87 = sphi 0, %s73
      %s91 = sphi 0, %s91
      %s93 = sphi 0, %s91
      %s94 = sphi 0, %s93
      %s108 = sphi 0, %s94
      %s112 = sphi 0, %s112
      %s114 = sphi 0, %s112
      %s115 = sphi 0, %s114
      %s129 = sphi 0, %s115
      %s133 = sphi 0, %s133
      %s135 = sphi 0, %s133
      %s136 = sphi 0, %s135
      %s150 = sphi 0, %s136
      %s154 = sphi 0, %s154
      %s156 = sphi 0, %s154
      %s157 = sphi 0, %s156
      %s171 = sphi 0, %s157
      %s177 = sphi 0, %s179
      %s180 = sphi 0, %s177
      %s181 = sphi 0, %s180
      %s197 = sphi 0, %s181
    $region4: #{tpu_custom_call.1} parent=1 // loop_header_branch
      %18 = sbr.rel (%p16) target = $region8
    $region5: #{tpu_custom_call.1} parent=1 // loop_body
      %s20 = ssub.s32 %s15, 1
      %s21 = ssub.s32 %s15, 2
      %s22 = sadd.s32 %s15, 1
      %s23 = ssub.s32 %s15, %s22
      %p24 = scmp.eq.s32.totalorder %s23, 0
      %s26 = sadd.s32 %s25, 1
      %s27 = scalar_select %p24, %s25, %s26
      %p30 = pneg %p24
      %p31 = scmp.eq.s32.totalorder %s15, 1
      %p32 = por %p30, %p31
      %p33 = scmp.ne.s32.totalorder %s25, %s28
      %p34 = scmp.eq.s32.totalorder %s15, 0
      %p35 = por %p33, %p34
      %p36 = scmp.ne.s32.totalorder %s25, %s28
      %p37 = scmp.eq.s32.totalorder %s20, 1
      %p38 = por %p36, %p37
      %p39 = scmp.ne.s32.totalorder %s28, %s29
      %p40 = scmp.eq.s32.totalorder %s20, 0
      %p41 = por %p39, %p40
      %p42 = scmp.ne.s32.totalorder %s28, %s29
      %p43 = scmp.eq.s32.totalorder %s21, 1
      %p44 = por %p42, %p43
      %p46 = scmp.ne.s32.totalorder %s29, %s45
      %p47 = scmp.eq.s32.totalorder %s21, 0
      %p48 = por %p46, %p47
      %s50 = sadd.s32 %s49, 1
      %p53 = scmp.eq.s32.totalorder %s15, 1
      %p54 = scmp.ne.s32.totalorder %s49, %s51
      %p55 = scmp.eq.s32.totalorder %s15, 0
      %p56 = por %p54, %p55
      %p57 = scmp.ne.s32.totalorder %s49, %s51
      %p58 = scmp.eq.s32.totalorder %s20, 1
      %p59 = por %p57, %p58
      %p60 = scmp.ne.s32.totalorder %s51, %s52
      %p61 = scmp.eq.s32.totalorder %s20, 0
      %p62 = por %p60, %p61
      %p63 = scmp.ne.s32.totalorder %s51, %s52
      %p64 = scmp.eq.s32.totalorder %s21, 1
      %p65 = por %p63, %p64
      %p67 = scmp.ne.s32.totalorder %s52, %s66
      %p68 = scmp.eq.s32.totalorder %s21, 0
      %p69 = por %p67, %p68
      %s71 = sadd.s32 %s70, 1
      %p74 = scmp.eq.s32.totalorder %s15, 1
      %p75 = scmp.ne.s32.totalorder %s70, %s72
      %p76 = scmp.eq.s32.totalorder %s15, 0
      %p77 = por %p75, %p76
      %p78 = scmp.ne.s32.totalorder %s70, %s72
      %p79 = scmp.eq.s32.totalorder %s20, 1
      %p80 = por %p78, %p79
      %p81 = scmp.ne.s32.totalorder %s72, %s73
      %p82 = scmp.eq.s32.totalorder %s20, 0
      %p83 = por %p81, %p82
      %p84 = scmp.ne.s32.totalorder %s72, %s73
      %p85 = scmp.eq.s32.totalorder %s21, 1
      %p86 = por %p84, %p85
      %p88 = scmp.ne.s32.totalorder %s73, %s87
      %p89 = scmp.eq.s32.totalorder %s21, 0
      %p90 = por %p88, %p89
      %s92 = sadd.s32 %s91, 1
      %p95 = scmp.eq.s32.totalorder %s15, 1
      %p96 = scmp.ne.s32.totalorder %s91, %s93
      %p97 = scmp.eq.s32.totalorder %s15, 0
      %p98 = por %p96, %p97
      %p99 = scmp.ne.s32.totalorder %s91, %s93
      %p100 = scmp.eq.s32.totalorder %s20, 1
      %p101 = por %p99, %p100
      %p102 = scmp.ne.s32.totalorder %s93, %s94
      %p103 = scmp.eq.s32.totalorder %s20, 0
      %p104 = por %p102, %p103
      %p105 = scmp.ne.s32.totalorder %s93, %s94
      %p106 = scmp.eq.s32.totalorder %s21, 1
      %p107 = por %p105, %p106
      %p109 = scmp.ne.s32.totalorder %s94, %s108
      %p110 = scmp.eq.s32.totalorder %s21, 0
      %p111 = por %p109, %p110
      %s113 = sadd.s32 %s112, 1
      %p116 = scmp.eq.s32.totalorder %s15, 1
      %p117 = scmp.ne.s32.totalorder %s112, %s114
      %p118 = scmp.eq.s32.totalorder %s15, 0
      %p119 = por %p117, %p118
      %p120 = scmp.ne.s32.totalorder %s112, %s114
      %p121 = scmp.eq.s32.totalorder %s20, 1
      %p122 = por %p120, %p121
      %p123 = scmp.ne.s32.totalorder %s114, %s115
      %p124 = scmp.eq.s32.totalorder %s20, 0
      %p125 = por %p123, %p124
      %p126 = scmp.ne.s32.totalorder %s114, %s115
      %p127 = scmp.eq.s32.totalorder %s21, 1
      %p128 = por %p126, %p127
      %p130 = scmp.ne.s32.totalorder %s115, %s129
      %p131 = scmp.eq.s32.totalorder %s21, 0
      %p132 = por %p130, %p131
      %s134 = sadd.s32 %s133, 1
      %p137 = scmp.eq.s32.totalorder %s15, 1
      %p138 = scmp.ne.s32.totalorder %s133, %s135
      %p139 = scmp.eq.s32.totalorder %s15, 0
      %p140 = por %p138, %p139
      %p141 = scmp.ne.s32.totalorder %s133, %s135
      %p142 = scmp.eq.s32.totalorder %s20, 1
      %p143 = por %p141, %p142
      %p144 = scmp.ne.s32.totalorder %s135, %s136
      %p145 = scmp.eq.s32.totalorder %s20, 0
      %p146 = por %p144, %p145
      %p147 = scmp.ne.s32.totalorder %s135, %s136
      %p148 = scmp.eq.s32.totalorder %s21, 1
      %p149 = por %p147, %p148
      %p151 = scmp.ne.s32.totalorder %s136, %s150
      %p152 = scmp.eq.s32.totalorder %s21, 0
      %p153 = por %p151, %p152
      %s155 = sadd.s32 %s154, 1
      %p158 = scmp.eq.s32.totalorder %s15, 1
      %p159 = scmp.ne.s32.totalorder %s154, %s156
      %p160 = scmp.eq.s32.totalorder %s15, 0
      %p161 = por %p159, %p160
      %p162 = scmp.ne.s32.totalorder %s154, %s156
      %p163 = scmp.eq.s32.totalorder %s20, 1
      %p164 = por %p162, %p163
      %p165 = scmp.ne.s32.totalorder %s156, %s157
      %p166 = scmp.eq.s32.totalorder %s20, 0
      %p167 = por %p165, %p166
      %p168 = scmp.ne.s32.totalorder %s156, %s157
      %p169 = scmp.eq.s32.totalorder %s21, 1
      %p170 = por %p168, %p169
      %p172 = scmp.ne.s32.totalorder %s157, %s171
      %p173 = scmp.eq.s32.totalorder %s21, 0
      %p174 = por %p172, %p173
      %s175 = ssub.s32 %s15, %s22
      %p176 = scmp.eq.s32.totalorder %s175, 0
      %s178 = sadd.s32 %s177, 1
      %s179 = scalar_select %p176, %s177, %s178
      %p182 = pneg %p176
      %p183 = scmp.eq.s32.totalorder %s15, 1
      %p184 = por %p182, %p183
      %p185 = scmp.ne.s32.totalorder %s177, %s180
      %p186 = scmp.eq.s32.totalorder %s15, 0
      %p187 = por %p185, %p186
      %p188 = scmp.ne.s32.totalorder %s177, %s180
      %p189 = scmp.eq.s32.totalorder %s20, 1
      %p190 = por %p188, %p189
      %p191 = scmp.ne.s32.totalorder %s180, %s181
      %p192 = scmp.eq.s32.totalorder %s20, 0
      %p193 = por %p191, %p192
      %p194 = scmp.ne.s32.totalorder %s180, %s181
      %p195 = scmp.eq.s32.totalorder %s21, 1
      %p196 = por %p194, %p195
      %p198 = scmp.ne.s32.totalorder %s181, %s197
      %p199 = scmp.eq.s32.totalorder %s21, 0
      %p200 = por %p198, %p199
      %p201 = scmp.le.s32.totalorder 1, %s15
      %p202 = scmp.lt.s32.totalorder %s15, 3
      %p203 = pnand %p201, %p202
      %p204 = pneg %p203
      // Predicated region
      $region9: #{tpu_custom_call.1} parent=5 // pred_check
        _
      $region10: #{tpu_custom_call.1} parent=5 // pred_check_branch
        %206 = sbr.rel (%p203) target = $region12
      $region11: #{tpu_custom_call.1} parent=5 // pred_region
        %s207 = ssub.s32 %s15, 1
        // Predicated region
        $region13: #{tpu_custom_call.1} parent=11 // pred_check
          %p208 = pneg %p62
        $region14: #{tpu_custom_call.1} parent=11 // pred_check_branch
          %210 = sbr.rel (%p208) target = $region16
        $region15: #{tpu_custom_call.1} parent=11 // pred_region
          %212 = vsyncadd [#allocation4], 0
          %s213 = sshll.u32 %s1, 4
          %s214 = int_to_ptr.hbm [resolvable:$true] %s213
          %s215 = sshll.u32 [#allocation3], 4
          %s216 = int_to_ptr.vmem [resolvable:$true] %s215
          %221 = dma.hbm_to_vmem [thread:$0]  %s214, 20480, %s216, [#allocation4], 64, 64, 4
        $region16: #{tpu_custom_call.1} parent=11 // pred_fallthru
          _
        // Predicated region
        $region17: #{tpu_custom_call.1} parent=11 // pred_check
          %p222 = pneg %p83
        $region18: #{tpu_custom_call.1} parent=11 // pred_check_branch
          %224 = sbr.rel (%p222) target = $region20
        $region19: #{tpu_custom_call.1} parent=11 // pred_region
          _
        $region20: #{tpu_custom_call.1} parent=11 // pred_fallthru
          _
        // Predicated region
        $region21: #{tpu_custom_call.1} parent=11 // pred_check
          %p225 = pneg %p104
        $region22: #{tpu_custom_call.1} parent=11 // pred_check_branch
          %227 = sbr.rel (%p225) target = $region24
        $region23: #{tpu_custom_call.1} parent=11 // pred_region
          _
        $region24: #{tpu_custom_call.1} parent=11 // pred_fallthru
          _
        // Predicated region
        $region25: #{tpu_custom_call.1} parent=11 // pred_check
          %p228 = pneg %p125
        $region26: #{tpu_custom_call.1} parent=11 // pred_check_branch
          %230 = sbr.rel (%p228) target = $region28
        $region27: #{tpu_custom_call.1} parent=11 // pred_region
          _
        $region28: #{tpu_custom_call.1} parent=11 // pred_fallthru
          _
        // Predicated region
        $region29: #{tpu_custom_call.1} parent=11 // pred_check
          %p231 = pneg %p146
        $region30: #{tpu_custom_call.1} parent=11 // pred_check_branch
          %233 = sbr.rel (%p231) target = $region32
        $region31: #{tpu_custom_call.1} parent=11 // pred_region
          %235 = vsyncadd [#allocation6], 0
          %s236 = sshll.u32 %s5, 4
          %s237 = int_to_ptr.hbm [resolvable:$true] %s236
          %s238 = sshll.u32 [#allocation5], 4
          %s239 = int_to_ptr.vmem [resolvable:$true] %s238
          %244 = dma.hbm_to_vmem [thread:$0]  %s237, 1024, %s239, [#allocation6], 64, 64, 4
        $region32: #{tpu_custom_call.1} parent=11 // pred_fallthru
          _
        // Predicated region
        $region33: #{tpu_custom_call.1} parent=11 // pred_check
          %p245 = pneg %p167
        $region34: #{tpu_custom_call.1} parent=11 // pred_check_branch
          %247 = sbr.rel (%p245) target = $region36
        $region35: #{tpu_custom_call.1} parent=11 // pred_region
          _
        $region36: #{tpu_custom_call.1} parent=11 // pred_fallthru
          _
      $region12: #{tpu_custom_call.1} parent=5 // pred_fallthru
        _
      %p248 = scmp.lt.s32.totalorder %s15, 2
      // Predicated region
      $region37: #{tpu_custom_call.1} parent=5 // pred_check
        %p249 = pneg %p248
      $region38: #{tpu_custom_call.1} parent=5 // pred_check_branch
        %251 = sbr.rel (%p249) target = $region40
      $region39: #{tpu_custom_call.1} parent=5 // pred_region
        // Predicated region
        $region41: #{tpu_custom_call.1} parent=39 // pred_check
          %p252 = pneg %p35
        $region42: #{tpu_custom_call.1} parent=39 // pred_check_branch
          %254 = sbr.rel (%p252) target = $region44
        $region43: #{tpu_custom_call.1} parent=39 // pred_region
          %s255 = smul.u32 2, %s15
          %p256 = scmp.lt.s32.totalorder %s255, 3
          %s257 = scalar_select %p256, %s255, 3
          %s258 = smul.addr %s257, 2
          %s259 = smul.addr %s258, 8
          %s260 = scalar_lea.vmem %s0, %s259
          %s261 = smul.u32 2, %s15
        $region44: #{tpu_custom_call.1} parent=39 // pred_fallthru
          _
      $region40: #{tpu_custom_call.1} parent=5 // pred_fallthru
        _
      %p262 = scmp.le.s32.totalorder 1, %s15
      %p263 = scmp.lt.s32.totalorder %s15, 3
      %p264 = pnand %p262, %p263
      %p265 = pneg %p264
      // Predicated region
      $region45: #{tpu_custom_call.1} parent=5 // pred_check
        _
      $region46: #{tpu_custom_call.1} parent=5 // pred_check_branch
        %267 = sbr.rel (%p264) target = $region48
      $region47: #{tpu_custom_call.1} parent=5 // pred_region
        %s268 = ssub.s32 %s15, 1
        // Predicated region
        $region49: #{tpu_custom_call.1} parent=47 // pred_check
          %p269 = pneg %p62
        $region50: #{tpu_custom_call.1} parent=47 // pred_check_branch
          %271 = sbr.rel (%p269) target = $region52
        $region51: #{tpu_custom_call.1} parent=47 // pred_region
          %273 = dma.done [#allocation4], 20480
        $region52: #{tpu_custom_call.1} parent=47 // pred_fallthru
          _
        // Predicated region
        $region53: #{tpu_custom_call.1} parent=47 // pred_check
          %p274 = pneg %p146
        $region54: #{tpu_custom_call.1} parent=47 // pred_check_branch
          %276 = sbr.rel (%p274) target = $region56
        $region55: #{tpu_custom_call.1} parent=47 // pred_region
          %278 = dma.done [#allocation6], 1024
        $region56: #{tpu_custom_call.1} parent=47 // pred_fallthru
          _
        %s279 = smul.u32 2, %s20
        %p280 = scmp.lt.s32.totalorder %s279, 3
        %s281 = scalar_select %p280, %s279, 3
        %s282 = smul.addr %s281, 2
        %s283 = smul.addr %s282, 8
        %s284 = scalar_lea.vmem %s0, %s283
        %p285 = pneg %p41
        %p286 = pneg %p38
        %p287 = pneg %p62
        %p288 = pneg %p59
        %p289 = pneg %p83
        %p290 = pneg %p80
        %p291 = pneg %p104
        %p292 = pneg %p101
        %p293 = pneg %p125
        %p294 = pneg %p122
        %p295 = pneg %p146
        %p296 = pneg %p143
        %p297 = pneg %p167
        %p298 = pneg %p164
        %p299 = pneg %p193
        %p300 = pneg %p190
        %s301 = smul.u32 2, %s20
        %p302 = scmp.lt.s32.totalorder %s301, 3
        %s303 = scalar_select %p302, %s301, 3
        %s304 = smul.addr %s303, 2
        %s305 = smul.addr %s304, 8
        %s306 = scalar_lea.vmem %s7, %s305
        %s307 = smul.u32 2, %s20
        %p308 = scmp.lt.s32.totalorder %s307, 3
        %s309 = scalar_select %p308, %s307, 3
        %s310 = smul.addr %s309, 2
        %s311 = smul.addr %s310, 8
        %s312 = scalar_lea.vmem %s0, %s311
        %s313 = smul.u32 2, %s20
        %s314 = smul.u32 2, %s20
        %p315 = scmp.lt.s32.totalorder %s314, 3
        %s316 = scalar_select %p315, %s314, 3
        %s317 = smul.addr %s316, 2
        %s318 = smul.addr %s317, 8
        %s319 = scalar_lea.vmem %s7, %s318
        %s320 = smul.u32 2, %s20
        %322 = vst [vmem:[#allocation2] sm:$0xff] 0.0
        %323 = vst [vmem:[#allocation2 + $0x8] sm:$0xff] 0.0
        %324 = vst [vmem:[#allocation2 + $0x10] sm:$0xff] 0.0
        %325 = vst [vmem:[#allocation2 + $0x18] sm:$0xff] 0.0
        %326 = vst [vmem:[#allocation2 + $0x20] sm:$0xff] 0.0
        %327 = vst [vmem:[#allocation2 + $0x28] sm:$0xff] 0.0
        %v328 = vld [vmem:[%s312] sm:$0xff]
        %v329 = vld [vmem:[%s312 + $0x8] sm:$0xff]
        %v330 = vld [vmem:[%s312 + $0x10] sm:$0xff]
        %v331 = vld [vmem:[%s312 + $0x18] sm:$0xff]
        %vm332 = vcmask 80896
        %333 = vst.msk [vmem:[#allocation2 + $0x8] sm:$0xff] %vm332, %v328
        %334 = vst.msk [vmem:[#allocation2 + $0x10] sm:$0xff] %vm332, %v329
        %335 = vst.msk [vmem:[#allocation2 + $0x20] sm:$0xff] %vm332, %v330
        %336 = vst.msk [vmem:[#allocation2 + $0x28] sm:$0xff] %vm332, %v331
        %v337 = vld [vmem:[#allocation2 + $0x8] sm:$0xff]
        %v338 = vld [vmem:[#allocation2 + $0x10] sm:$0xff]
        %v339 = vld [vmem:[#allocation2 + $0x20] sm:$0xff]
        %v340 = vld [vmem:[#allocation2 + $0x28] sm:$0xff]
        %v341 = vld [vmem:[#allocation3] sm:$0xf]
        %v342 = vld [vmem:[#allocation3 + $0x4] sm:$0xf]
        %v343 = vld [vmem:[#allocation3 + $0x8] sm:$0xf]
        %v344 = vld [vmem:[#allocation3 + $0xc] sm:$0xf]
        %v345 = vld [vmem:[#allocation3 + $0x10] sm:$0xf]
        %v346 = vld [vmem:[#allocation3 + $0x14] sm:$0xf]
        %v347 = vld [vmem:[#allocation3 + $0x18] sm:$0xf]
        %v348 = vld [vmem:[#allocation3 + $0x1c] sm:$0xf]
        %v349 = vld [vmem:[#allocation3 + $0x20] sm:$0xf]
        %v350 = vld [vmem:[#allocation3 + $0x24] sm:$0xf]
        %v351 = vld [vmem:[#allocation3 + $0x28] sm:$0xf]
        %v352 = vld [vmem:[#allocation3 + $0x2c] sm:$0xf]
        %v353 = vld [vmem:[#allocation3 + $0x30] sm:$0xf]
        %v354 = vld [vmem:[#allocation3 + $0x34] sm:$0xf]
        %v355 = vld [vmem:[#allocation3 + $0x38] sm:$0xf]
        %v356 = vld [vmem:[#allocation3 + $0x3c] sm:$0xf]
        %v357 = vld [vmem:[#allocation3 + $0x40] sm:$0xf]
        %v358 = vld [vmem:[#allocation3 + $0x44] sm:$0xf]
        %v359 = vld [vmem:[#allocation3 + $0x48] sm:$0xf]
        %v360 = vld [vmem:[#allocation3 + $0x4c] sm:$0xf]
        %v361 = vld [vmem:[#allocation3 + $0x50] sm:$0xf]
        %v362 = vld [vmem:[#allocation3 + $0x54] sm:$0xf]
        %v363 = vld [vmem:[#allocation3 + $0x58] sm:$0xf]
        %v364 = vld [vmem:[#allocation3 + $0x5c] sm:$0xf]
        %v365 = vld [vmem:[#allocation3 + $0x60] sm:$0xf]
        %v366 = vld [vmem:[#allocation3 + $0x64] sm:$0xf]
        %v367 = vld [vmem:[#allocation3 + $0x68] sm:$0xf]
        %v368 = vld [vmem:[#allocation3 + $0x6c] sm:$0xf]
        %v369 = vld [vmem:[#allocation3 + $0x70] sm:$0xf]
        %v370 = vld [vmem:[#allocation3 + $0x74] sm:$0xf]
        %v371 = vld [vmem:[#allocation3 + $0x78] sm:$0xf]
        %v372 = vld [vmem:[#allocation3 + $0x7c] sm:$0xf]
        %v373 = vld [vmem:[%s2] sm:$0x1]
        %374 = vst [vmem:[#allocation2 + $0x8] sm:$0xff] %v337
        %375 = vst [vmem:[#allocation2 + $0x10] sm:$0xff] %v338
        %376 = vst [vmem:[#allocation2 + $0x20] sm:$0xff] %v339
        %377 = vst [vmem:[#allocation2 + $0x28] sm:$0xff] %v340
        %v378 = vld [vmem:[#allocation2 + $0x7] sm:$0xff]
        %v379 = vld [vmem:[#allocation2 + $0xf] sm:$0xff]
        %v380 = vld [vmem:[#allocation2 + $0x1f] sm:$0xff]
        %v381 = vld [vmem:[#allocation2 + $0x27] sm:$0xff]
        %v382 = vpack.c.bf16 %v378, %v378
        %v383 = vpack.c.bf16 %v379, %v379
        %v384 = vpack.c.bf16 %v380, %v380
        %v385 = vpack.c.bf16 %v381, %v381
        %v386 = vpack.c.bf16 %v337, %v337
        %v387 = vpack.c.bf16 %v338, %v338
        %v388 = vpack.c.bf16 %v339, %v339
        %v389 = vpack.c.bf16 %v340, %v340
        %v394 = vunpack.c.l.b16 %v382
        %v395 = vunpack.c.l.b16 %v383
        %v396 = vunpack.c.l.b16 %v384
        %v397 = vunpack.c.l.b16 %v385
        %v398 = vpack.c.b16 %v395, %v394
        %v399 = vpack.c.b16 %v397, %v396
        %v406 = vunpack.c.l.b16 %v386
        %v407 = vunpack.c.l.b16 %v387
        %v408 = vunpack.c.l.b16 %v388
        %v409 = vunpack.c.l.b16 %v389
        %v410 = vpack.c.b16 %v407, %v406
        %v411 = vpack.c.b16 %v409, %v408
        %v415 = vperm.slane %v373, 0
        %v449 = vunpack.c.l.b16 %v341
        %v450 = vunpack.c.l.b16 %v342
        %v451 = vunpack.c.l.b16 %v343
        %v452 = vunpack.c.l.b16 %v344
        %v453 = vunpack.c.l.b16 %v345
        %v454 = vunpack.c.l.b16 %v346
        %v455 = vunpack.c.l.b16 %v347
        %v456 = vunpack.c.l.b16 %v348
        %v457 = vunpack.c.l.b16 %v349
        %v458 = vunpack.c.l.b16 %v350
        %v459 = vunpack.c.l.b16 %v351
        %v460 = vunpack.c.l.b16 %v352
        %v461 = vunpack.c.l.b16 %v353
        %v462 = vunpack.c.l.b16 %v354
        %v463 = vunpack.c.l.b16 %v355
        %v464 = vunpack.c.l.b16 %v356
        %v465 = vunpack.c.l.b16 %v357
        %v466 = vunpack.c.l.b16 %v358
        %v467 = vunpack.c.l.b16 %v359
        %v468 = vunpack.c.l.b16 %v360
        %v469 = vunpack.c.l.b16 %v361
        %v470 = vunpack.c.l.b16 %v362
        %v471 = vunpack.c.l.b16 %v363
        %v472 = vunpack.c.l.b16 %v364
        %v473 = vunpack.c.l.b16 %v365
        %v474 = vunpack.c.l.b16 %v366
        %v475 = vunpack.c.l.b16 %v367
        %v476 = vunpack.c.l.b16 %v368
        %v477 = vunpack.c.l.b16 %v369
        %v478 = vunpack.c.l.b16 %v370
        %v479 = vunpack.c.l.b16 %v371
        %v480 = vunpack.c.l.b16 %v372
        %v481 = vpack.c.b16 %v450, %v449
        %v482 = vpack.c.b16 %v452, %v451
        %v483 = vpack.c.b16 %v454, %v453
        %v484 = vpack.c.b16 %v456, %v455
        %v485 = vpack.c.b16 %v458, %v457
        %v486 = vpack.c.b16 %v460, %v459
        %v487 = vpack.c.b16 %v462, %v461
        %v488 = vpack.c.b16 %v464, %v463
        %v489 = vpack.c.b16 %v466, %v465
        %v490 = vpack.c.b16 %v468, %v467
        %v491 = vpack.c.b16 %v470, %v469
        %v492 = vpack.c.b16 %v472, %v471
        %v493 = vpack.c.b16 %v474, %v473
        %v494 = vpack.c.b16 %v476, %v475
        %v495 = vpack.c.b16 %v478, %v477
        %v496 = vpack.c.b16 %v480, %v479
        %513 = vmatpush.bf16.msra.mxu0 %v488
        %514 = vmatpush.bf16.msra.mxu0 %v487
        %515 = vmatpush.bf16.msra.mxu0 %v486
        %516 = vmatpush.bf16.msra.mxu0 %v485
        %517 = vmatpush.bf16.msra.mxu0 %v484
        %518 = vmatpush.bf16.msra.mxu0 %v483
        %519 = vmatpush.bf16.msra.mxu0 %v482
        %520 = vmatpush.bf16.msra.mxu0 %v481
        %521 = vmatmul.bf16.gmra.mxu0 %v398
        %v522 = vpop.f32.mrf.mxu0
        %v523 = vadd.f32 %v415, %v522
        %v524 = vpop.f32.mrf.mxu0
        %v525 = vadd.f32 %v415, %v524
        %526 = vmatmul.bf16.gmra.mxu0 %v399
        %v527 = vpop.f32.mrf.mxu0
        %v528 = vadd.f32 %v415, %v527
        %v529 = vpop.f32.mrf.mxu0
        %v530 = vadd.f32 %v415, %v529
        %531 = vdwg.mxu0
        %532 = vmatpush.bf16.msra.mxu0 %v496
        %533 = vmatpush.bf16.msra.mxu0 %v495
        %534 = vmatpush.bf16.msra.mxu0 %v494
        %535 = vmatpush.bf16.msra.mxu0 %v493
        %536 = vmatpush.bf16.msra.mxu0 %v492
        %537 = vmatpush.bf16.msra.mxu0 %v491
        %538 = vmatpush.bf16.msra.mxu0 %v490
        %539 = vmatpush.bf16.msra.mxu0 %v489
        %540 = vmatmul.bf16.gmra.mxu0 %v410
        %v541 = vpop.f32.mrf.mxu0
        %v542 = vadd.f32 %v523, %v541
        %v543 = vpop.f32.mrf.mxu0
        %v544 = vadd.f32 %v525, %v543
        %545 = vmatmul.bf16.gmra.mxu0 %v411
        %v546 = vpop.f32.mrf.mxu0
        %v547 = vadd.f32 %v528, %v546
        %v548 = vpop.f32.mrf.mxu0
        %v549 = vadd.f32 %v530, %v548
        %550 = vdwg.mxu0
        %v551 = vmax.f32 %v542, 0.0
        %v552 = vmax.f32 %v544, 0.0
        %v553 = vmax.f32 %v547, 0.0
        %v554 = vmax.f32 %v549, 0.0
        %s555 = scalar_lea.vmem [#allocation3], 128
        %v556 = vld [vmem:[%s555] sm:$0xf]
        %v557 = vld [vmem:[%s555 + $0x4] sm:$0xf]
        %v558 = vld [vmem:[%s555 + $0x8] sm:$0xf]
        %v559 = vld [vmem:[%s555 + $0xc] sm:$0xf]
        %v560 = vld [vmem:[%s555 + $0x10] sm:$0xf]
        %v561 = vld [vmem:[%s555 + $0x14] sm:$0xf]
        %v562 = vld [vmem:[%s555 + $0x18] sm:$0xf]
        %v563 = vld [vmem:[%s555 + $0x1c] sm:$0xf]
        %v564 = vld [vmem:[%s555 + $0x20] sm:$0xf]
        %v565 = vld [vmem:[%s555 + $0x24] sm:$0xf]
        %v566 = vld [vmem:[%s555 + $0x28] sm:$0xf]
        %v567 = vld [vmem:[%s555 + $0x2c] sm:$0xf]
        %v568 = vld [vmem:[%s555 + $0x30] sm:$0xf]
        %v569 = vld [vmem:[%s555 + $0x34] sm:$0xf]
        %v570 = vld [vmem:[%s555 + $0x38] sm:$0xf]
        %v571 = vld [vmem:[%s555 + $0x3c] sm:$0xf]
        %v572 = vld [vmem:[%s555 + $0x40] sm:$0xf]
        %v573 = vld [vmem:[%s555 + $0x44] sm:$0xf]
        %v574 = vld [vmem:[%s555 + $0x48] sm:$0xf]
        %v575 = vld [vmem:[%s555 + $0x4c] sm:$0xf]
        %v576 = vld [vmem:[%s555 + $0x50] sm:$0xf]
        %v577 = vld [vmem:[%s555 + $0x54] sm:$0xf]
        %v578 = vld [vmem:[%s555 + $0x58] sm:$0xf]
        %v579 = vld [vmem:[%s555 + $0x5c] sm:$0xf]
        %v580 = vld [vmem:[%s555 + $0x60] sm:$0xf]
        %v581 = vld [vmem:[%s555 + $0x64] sm:$0xf]
        %v582 = vld [vmem:[%s555 + $0x68] sm:$0xf]
        %v583 = vld [vmem:[%s555 + $0x6c] sm:$0xf]
        %v584 = vld [vmem:[%s555 + $0x70] sm:$0xf]
        %v585 = vld [vmem:[%s555 + $0x74] sm:$0xf]
        %v586 = vld [vmem:[%s555 + $0x78] sm:$0xf]
        %v587 = vld [vmem:[%s555 + $0x7c] sm:$0xf]
        %s588 = scalar_lea.vmem %s2, 1
        %v589 = vld [vmem:[%s588] sm:$0x1]
        %590 = vst [vmem:[#allocation2 + $0x8] sm:$0xff] %v551
        %591 = vst [vmem:[#allocation2 + $0x10] sm:$0xff] %v552
        %592 = vst [vmem:[#allocation2 + $0x20] sm:$0xff] %v553
        %593 = vst [vmem:[#allocation2 + $0x28] sm:$0xff] %v554
        %v594 = vld [vmem:[#allocation2 + $0x7] sm:$0xff]
        %v595 = vld [vmem:[#allocation2 + $0xf] sm:$0xff]
        %v596 = vld [vmem:[#allocation2 + $0x1f] sm:$0xff]
        %v597 = vld [vmem:[#allocation2 + $0x27] sm:$0xff]
        %v598 = vpack.c.bf16 %v594, %v594
        %v599 = vpack.c.bf16 %v595, %v595
        %v600 = vpack.c.bf16 %v596, %v596
        %v601 = vpack.c.bf16 %v597, %v597
        %v602 = vpack.c.bf16 %v551, %v551
        %v603 = vpack.c.bf16 %v552, %v552
        %v604 = vpack.c.bf16 %v553, %v553
        %v605 = vpack.c.bf16 %v554, %v554
        %v610 = vunpack.c.l.b16 %v598
        %v611 = vunpack.c.l.b16 %v599
        %v612 = vunpack.c.l.b16 %v600
        %v613 = vunpack.c.l.b16 %v601
        %v614 = vpack.c.b16 %v611, %v610
        %v615 = vpack.c.b16 %v613, %v612
        %v622 = vunpack.c.l.b16 %v602
        %v623 = vunpack.c.l.b16 %v603
        %v624 = vunpack.c.l.b16 %v604
        %v625 = vunpack.c.l.b16 %v605
        %v626 = vpack.c.b16 %v623, %v622
        %v627 = vpack.c.b16 %v625, %v624
        %v631 = vperm.slane %v589, 0
        %v665 = vunpack.c.l.b16 %v556
        %v666 = vunpack.c.l.b16 %v557
        %v667 = vunpack.c.l.b16 %v558
        %v668 = vunpack.c.l.b16 %v559
        %v669 = vunpack.c.l.b16 %v560
        %v670 = vunpack.c.l.b16 %v561
        %v671 = vunpack.c.l.b16 %v562
        %v672 = vunpack.c.l.b16 %v563
        %v673 = vunpack.c.l.b16 %v564
        %v674 = vunpack.c.l.b16 %v565
        %v675 = vunpack.c.l.b16 %v566
        %v676 = vunpack.c.l.b16 %v567
        %v677 = vunpack.c.l.b16 %v568
        %v678 = vunpack.c.l.b16 %v569
        %v679 = vunpack.c.l.b16 %v570
        %v680 = vunpack.c.l.b16 %v571
        %v681 = vunpack.c.l.b16 %v572
        %v682 = vunpack.c.l.b16 %v573
        %v683 = vunpack.c.l.b16 %v574
        %v684 = vunpack.c.l.b16 %v575
        %v685 = vunpack.c.l.b16 %v576
        %v686 = vunpack.c.l.b16 %v577
        %v687 = vunpack.c.l.b16 %v578
        %v688 = vunpack.c.l.b16 %v579
        %v689 = vunpack.c.l.b16 %v580
        %v690 = vunpack.c.l.b16 %v581
        %v691 = vunpack.c.l.b16 %v582
        %v692 = vunpack.c.l.b16 %v583
        %v693 = vunpack.c.l.b16 %v584
        %v694 = vunpack.c.l.b16 %v585
        %v695 = vunpack.c.l.b16 %v586
        %v696 = vunpack.c.l.b16 %v587
        %v697 = vpack.c.b16 %v666, %v665
        %v698 = vpack.c.b16 %v668, %v667
        %v699 = vpack.c.b16 %v670, %v669
        %v700 = vpack.c.b16 %v672, %v671
        %v701 = vpack.c.b16 %v674, %v673
        %v702 = vpack.c.b16 %v676, %v675
        %v703 = vpack.c.b16 %v678, %v677
        %v704 = vpack.c.b16 %v680, %v679
        %v705 = vpack.c.b16 %v682, %v681
        %v706 = vpack.c.b16 %v684, %v683
        %v707 = vpack.c.b16 %v686, %v685
        %v708 = vpack.c.b16 %v688, %v687
        %v709 = vpack.c.b16 %v690, %v689
        %v710 = vpack.c.b16 %v692, %v691
        %v711 = vpack.c.b16 %v694, %v693
        %v712 = vpack.c.b16 %v696, %v695
        %729 = vmatpush.bf16.msra.mxu0 %v704
        %730 = vmatpush.bf16.msra.mxu0 %v703
        %731 = vmatpush.bf16.msra.mxu0 %v702
        %732 = vmatpush.bf16.msra.mxu0 %v701
        %733 = vmatpush.bf16.msra.mxu0 %v700
        %734 = vmatpush.bf16.msra.mxu0 %v699
        %735 = vmatpush.bf16.msra.mxu0 %v698
        %736 = vmatpush.bf16.msra.mxu0 %v697
        %737 = vmatmul.bf16.gmra.mxu0 %v614
        %v738 = vpop.f32.mrf.mxu0
        %v739 = vadd.f32 %v631, %v738
        %v740 = vpop.f32.mrf.mxu0
        %v741 = vadd.f32 %v631, %v740
        %742 = vmatmul.bf16.gmra.mxu0 %v615
        %v743 = vpop.f32.mrf.mxu0
        %v744 = vadd.f32 %v631, %v743
        %v745 = vpop.f32.mrf.mxu0
        %v746 = vadd.f32 %v631, %v745
        %747 = vdwg.mxu0
        %748 = vmatpush.bf16.msra.mxu0 %v712
        %749 = vmatpush.bf16.msra.mxu0 %v711
        %750 = vmatpush.bf16.msra.mxu0 %v710
        %751 = vmatpush.bf16.msra.mxu0 %v709
        %752 = vmatpush.bf16.msra.mxu0 %v708
        %753 = vmatpush.bf16.msra.mxu0 %v707
        %754 = vmatpush.bf16.msra.mxu0 %v706
        %755 = vmatpush.bf16.msra.mxu0 %v705
        %756 = vmatmul.bf16.gmra.mxu0 %v626
        %v757 = vpop.f32.mrf.mxu0
        %v758 = vadd.f32 %v739, %v757
        %v759 = vpop.f32.mrf.mxu0
        %v760 = vadd.f32 %v741, %v759
        %761 = vmatmul.bf16.gmra.mxu0 %v627
        %v762 = vpop.f32.mrf.mxu0
        %v763 = vadd.f32 %v744, %v762
        %v764 = vpop.f32.mrf.mxu0
        %v765 = vadd.f32 %v746, %v764
        %766 = vdwg.mxu0
        %v767 = vmax.f32 %v758, 0.0
        %v768 = vmax.f32 %v760, 0.0
        %v769 = vmax.f32 %v763, 0.0
        %v770 = vmax.f32 %v765, 0.0
        %v771 = vld [vmem:[%s3] sm:$0xf]
        %v772 = vld [vmem:[%s3 + $0x4] sm:$0xf]
        %v773 = vld [vmem:[%s3 + $0x8] sm:$0xf]
        %v774 = vld [vmem:[%s3 + $0xc] sm:$0xf]
        %v775 = vld [vmem:[%s3 + $0x10] sm:$0xf]
        %v776 = vld [vmem:[%s3 + $0x14] sm:$0xf]
        %v777 = vld [vmem:[%s3 + $0x18] sm:$0xf]
        %v778 = vld [vmem:[%s3 + $0x1c] sm:$0xf]
        %v779 = vld [vmem:[%s3 + $0x20] sm:$0xf]
        %v780 = vld [vmem:[%s3 + $0x24] sm:$0xf]
        %v781 = vld [vmem:[%s3 + $0x28] sm:$0xf]
        %v782 = vld [vmem:[%s3 + $0x2c] sm:$0xf]
        %v783 = vld [vmem:[%s3 + $0x30] sm:$0xf]
        %v784 = vld [vmem:[%s3 + $0x34] sm:$0xf]
        %v785 = vld [vmem:[%s3 + $0x38] sm:$0xf]
        %v786 = vld [vmem:[%s3 + $0x3c] sm:$0xf]
        %v787 = vld [vmem:[%s4] sm:$0x1]
        %v789 = vperm.slane %v787, 0
        %v807 = vunpack.c.l.b16 %v771
        %v808 = vunpack.c.l.b16 %v772
        %v809 = vunpack.c.l.b16 %v773
        %v810 = vunpack.c.l.b16 %v774
        %v811 = vunpack.c.l.b16 %v775
        %v812 = vunpack.c.l.b16 %v776
        %v813 = vunpack.c.l.b16 %v777
        %v814 = vunpack.c.l.b16 %v778
        %v815 = vunpack.c.l.b16 %v779
        %v816 = vunpack.c.l.b16 %v780
        %v817 = vunpack.c.l.b16 %v781
        %v818 = vunpack.c.l.b16 %v782
        %v819 = vunpack.c.l.b16 %v783
        %v820 = vunpack.c.l.b16 %v784
        %v821 = vunpack.c.l.b16 %v785
        %v822 = vunpack.c.l.b16 %v786
        %v823 = vpack.c.b16 %v808, %v807
        %v824 = vpack.c.b16 %v810, %v809
        %v825 = vpack.c.b16 %v812, %v811
        %v826 = vpack.c.b16 %v814, %v813
        %v827 = vpack.c.b16 %v816, %v815
        %v828 = vpack.c.b16 %v818, %v817
        %v829 = vpack.c.b16 %v820, %v819
        %v830 = vpack.c.b16 %v822, %v821
        %839 = vmatpush.bf16.msra.mxu0 %v830
        %840 = vmatpush.bf16.msra.mxu0 %v829
        %841 = vmatpush.bf16.msra.mxu0 %v828
        %842 = vmatpush.bf16.msra.mxu0 %v827
        %843 = vmatpush.bf16.msra.mxu0 %v826
        %844 = vmatpush.bf16.msra.mxu0 %v825
        %845 = vmatpush.bf16.msra.mxu0 %v824
        %846 = vmatpush.bf16.msra.mxu0 %v823
        %847 = vmatmul.bf16.gmra.mxu0 %v410
        %v848 = vpop.f32.mrf.mxu0
        %v849 = vadd.f32 %v789, %v848
        %v850 = vpop.f32.mrf.mxu0
        %v851 = vadd.f32 %v789, %v850
        %852 = vmatmul.bf16.gmra.mxu0 %v411
        %v853 = vpop.f32.mrf.mxu0
        %v854 = vadd.f32 %v789, %v853
        %v855 = vpop.f32.mrf.mxu0
        %v856 = vadd.f32 %v789, %v855
        %857 = vdwg.mxu0
        %v858 = vadd.f32 %v767, %v849
        %v859 = vadd.f32 %v768, %v851
        %v860 = vadd.f32 %v769, %v854
        %v861 = vadd.f32 %v770, %v856
        %v862 = vmax.f32 %v858, 0.0
        %v863 = vmax.f32 %v859, 0.0
        %v864 = vmax.f32 %v860, 0.0
        %v865 = vmax.f32 %v861, 0.0
        %s866 = scalar_lea.vmem [#allocation3], 256
        %v867 = vld [vmem:[%s866] sm:$0xf]
        %v868 = vld [vmem:[%s866 + $0x4] sm:$0xf]
        %v869 = vld [vmem:[%s866 + $0x8] sm:$0xf]
        %v870 = vld [vmem:[%s866 + $0xc] sm:$0xf]
        %v871 = vld [vmem:[%s866 + $0x10] sm:$0xf]
        %v872 = vld [vmem:[%s866 + $0x14] sm:$0xf]
        %v873 = vld [vmem:[%s866 + $0x18] sm:$0xf]
        %v874 = vld [vmem:[%s866 + $0x1c] sm:$0xf]
        %v875 = vld [vmem:[%s866 + $0x20] sm:$0xf]
        %v876 = vld [vmem:[%s866 + $0x24] sm:$0xf]
        %v877 = vld [vmem:[%s866 + $0x28] sm:$0xf]
        %v878 = vld [vmem:[%s866 + $0x2c] sm:$0xf]
        %v879 = vld [vmem:[%s866 + $0x30] sm:$0xf]
        %v880 = vld [vmem:[%s866 + $0x34] sm:$0xf]
        %v881 = vld [vmem:[%s866 + $0x38] sm:$0xf]
        %v882 = vld [vmem:[%s866 + $0x3c] sm:$0xf]
        %v883 = vld [vmem:[%s866 + $0x40] sm:$0xf]
        %v884 = vld [vmem:[%s866 + $0x44] sm:$0xf]
        %v885 = vld [vmem:[%s866 + $0x48] sm:$0xf]
        %v886 = vld [vmem:[%s866 + $0x4c] sm:$0xf]
        %v887 = vld [vmem:[%s866 + $0x50] sm:$0xf]
        %v888 = vld [vmem:[%s866 + $0x54] sm:$0xf]
        %v889 = vld [vmem:[%s866 + $0x58] sm:$0xf]
        %v890 = vld [vmem:[%s866 + $0x5c] sm:$0xf]
        %v891 = vld [vmem:[%s866 + $0x60] sm:$0xf]
        %v892 = vld [vmem:[%s866 + $0x64] sm:$0xf]
        %v893 = vld [vmem:[%s866 + $0x68] sm:$0xf]
        %v894 = vld [vmem:[%s866 + $0x6c] sm:$0xf]
        %v895 = vld [vmem:[%s866 + $0x70] sm:$0xf]
        %v896 = vld [vmem:[%s866 + $0x74] sm:$0xf]
        %v897 = vld [vmem:[%s866 + $0x78] sm:$0xf]
        %v898 = vld [vmem:[%s866 + $0x7c] sm:$0xf]
        %s899 = scalar_lea.vmem %s2, 2
        %v900 = vld [vmem:[%s899] sm:$0x1]
        %901 = vst [vmem:[#allocation2 + $0x8] sm:$0xff] %v862
        %902 = vst [vmem:[#allocation2 + $0x10] sm:$0xff] %v863
        %903 = vst [vmem:[#allocation2 + $0x20] sm:$0xff] %v864
        %904 = vst [vmem:[#allocation2 + $0x28] sm:$0xff] %v865
        %v905 = vld [vmem:[#allocation2 + $0x6] sm:$0xff]
        %v906 = vld [vmem:[#allocation2 + $0xe] sm:$0xff]
        %v907 = vld [vmem:[#allocation2 + $0x1e] sm:$0xff]
        %v908 = vld [vmem:[#allocation2 + $0x26] sm:$0xff]
        %v909 = vpack.c.bf16 %v905, %v905
        %v910 = vpack.c.bf16 %v906, %v906
        %v911 = vpack.c.bf16 %v907, %v907
        %v912 = vpack.c.bf16 %v908, %v908
        %v913 = vpack.c.bf16 %v862, %v862
        %v914 = vpack.c.bf16 %v863, %v863
        %v915 = vpack.c.bf16 %v864, %v864
        %v916 = vpack.c.bf16 %v865, %v865
        %v921 = vunpack.c.l.b16 %v909
        %v922 = vunpack.c.l.b16 %v910
        %v923 = vunpack.c.l.b16 %v911
        %v924 = vunpack.c.l.b16 %v912
        %v925 = vpack.c.b16 %v922, %v921
        %v926 = vpack.c.b16 %v924, %v923
        %v933 = vunpack.c.l.b16 %v913
        %v934 = vunpack.c.l.b16 %v914
        %v935 = vunpack.c.l.b16 %v915
        %v936 = vunpack.c.l.b16 %v916
        %v937 = vpack.c.b16 %v934, %v933
        %v938 = vpack.c.b16 %v936, %v935
        %v942 = vperm.slane %v900, 0
        %v976 = vunpack.c.l.b16 %v867
        %v977 = vunpack.c.l.b16 %v868
        %v978 = vunpack.c.l.b16 %v869
        %v979 = vunpack.c.l.b16 %v870
        %v980 = vunpack.c.l.b16 %v871
        %v981 = vunpack.c.l.b16 %v872
        %v982 = vunpack.c.l.b16 %v873
        %v983 = vunpack.c.l.b16 %v874
        %v984 = vunpack.c.l.b16 %v875
        %v985 = vunpack.c.l.b16 %v876
        %v986 = vunpack.c.l.b16 %v877
        %v987 = vunpack.c.l.b16 %v878
        %v988 = vunpack.c.l.b16 %v879
        %v989 = vunpack.c.l.b16 %v880
        %v990 = vunpack.c.l.b16 %v881
        %v991 = vunpack.c.l.b16 %v882
        %v992 = vunpack.c.l.b16 %v883
        %v993 = vunpack.c.l.b16 %v884
        %v994 = vunpack.c.l.b16 %v885
        %v995 = vunpack.c.l.b16 %v886
        %v996 = vunpack.c.l.b16 %v887
        %v997 = vunpack.c.l.b16 %v888
        %v998 = vunpack.c.l.b16 %v889
        %v999 = vunpack.c.l.b16 %v890
        %v1000 = vunpack.c.l.b16 %v891
        %v1001 = vunpack.c.l.b16 %v892
        %v1002 = vunpack.c.l.b16 %v893
        %v1003 = vunpack.c.l.b16 %v894
        %v1004 = vunpack.c.l.b16 %v895
        %v1005 = vunpack.c.l.b16 %v896
        %v1006 = vunpack.c.l.b16 %v897
        %v1007 = vunpack.c.l.b16 %v898
        %v1008 = vpack.c.b16 %v977, %v976
        %v1009 = vpack.c.b16 %v979, %v978
        %v1010 = vpack.c.b16 %v981, %v980
        %v1011 = vpack.c.b16 %v983, %v982
        %v1012 = vpack.c.b16 %v985, %v984
        %v1013 = vpack.c.b16 %v987, %v986
        %v1014 = vpack.c.b16 %v989, %v988
        %v1015 = vpack.c.b16 %v991, %v990
        %v1016 = vpack.c.b16 %v993, %v992
        %v1017 = vpack.c.b16 %v995, %v994
        %v1018 = vpack.c.b16 %v997, %v996
        %v1019 = vpack.c.b16 %v999, %v998
        %v1020 = vpack.c.b16 %v1001, %v1000
        %v1021 = vpack.c.b16 %v1003, %v1002
        %v1022 = vpack.c.b16 %v1005, %v1004
        %v1023 = vpack.c.b16 %v1007, %v1006
        %1040 = vmatpush.bf16.msra.mxu0 %v1015
        %1041 = vmatpush.bf16.msra.mxu0 %v1014
        %1042 = vmatpush.bf16.msra.mxu0 %v1013
        %1043 = vmatpush.bf16.msra.mxu0 %v1012
        %1044 = vmatpush.bf16.msra.mxu0 %v1011
        %1045 = vmatpush.bf16.msra.mxu0 %v1010
        %1046 = vmatpush.bf16.msra.mxu0 %v1009
        %1047 = vmatpush.bf16.msra.mxu0 %v1008
        %1048 = vmatmul.bf16.gmra.mxu0 %v925
        %v1049 = vpop.f32.mrf.mxu0
        %v1050 = vadd.f32 %v942, %v1049
        %v1051 = vpop.f32.mrf.mxu0
        %v1052 = vadd.f32 %v942, %v1051
        %1053 = vmatmul.bf16.gmra.mxu0 %v926
        %v1054 = vpop.f32.mrf.mxu0
        %v1055 = vadd.f32 %v942, %v1054
        %v1056 = vpop.f32.mrf.mxu0
        %v1057 = vadd.f32 %v942, %v1056
        %1058 = vdwg.mxu0
        %1059 = vmatpush.bf16.msra.mxu0 %v1023
        %1060 = vmatpush.bf16.msra.mxu0 %v1022
        %1061 = vmatpush.bf16.msra.mxu0 %v1021
        %1062 = vmatpush.bf16.msra.mxu0 %v1020
        %1063 = vmatpush.bf16.msra.mxu0 %v1019
        %1064 = vmatpush.bf16.msra.mxu0 %v1018
        %1065 = vmatpush.bf16.msra.mxu0 %v1017
        %1066 = vmatpush.bf16.msra.mxu0 %v1016
        %1067 = vmatmul.bf16.gmra.mxu0 %v937
        %v1068 = vpop.f32.mrf.mxu0
        %v1069 = vadd.f32 %v1050, %v1068
        %v1070 = vpop.f32.mrf.mxu0
        %v1071 = vadd.f32 %v1052, %v1070
        %1072 = vmatmul.bf16.gmra.mxu0 %v938
        %v1073 = vpop.f32.mrf.mxu0
        %v1074 = vadd.f32 %v1055, %v1073
        %v1075 = vpop.f32.mrf.mxu0
        %v1076 = vadd.f32 %v1057, %v1075
        %1077 = vdwg.mxu0
        %v1078 = vmax.f32 %v1069, 0.0
        %v1079 = vmax.f32 %v1071, 0.0
        %v1080 = vmax.f32 %v1074, 0.0
        %v1081 = vmax.f32 %v1076, 0.0
        %s1082 = scalar_lea.vmem [#allocation3], 384
        %v1083 = vld [vmem:[%s1082] sm:$0xf]
        %v1084 = vld [vmem:[%s1082 + $0x4] sm:$0xf]
        %v1085 = vld [vmem:[%s1082 + $0x8] sm:$0xf]
        %v1086 = vld [vmem:[%s1082 + $0xc] sm:$0xf]
        %v1087 = vld [vmem:[%s1082 + $0x10] sm:$0xf]
        %v1088 = vld [vmem:[%s1082 + $0x14] sm:$0xf]
        %v1089 = vld [vmem:[%s1082 + $0x18] sm:$0xf]
        %v1090 = vld [vmem:[%s1082 + $0x1c] sm:$0xf]
        %v1091 = vld [vmem:[%s1082 + $0x20] sm:$0xf]
        %v1092 = vld [vmem:[%s1082 + $0x24] sm:$0xf]
        %v1093 = vld [vmem:[%s1082 + $0x28] sm:$0xf]
        %v1094 = vld [vmem:[%s1082 + $0x2c] sm:$0xf]
        %v1095 = vld [vmem:[%s1082 + $0x30] sm:$0xf]
        %v1096 = vld [vmem:[%s1082 + $0x34] sm:$0xf]
        %v1097 = vld [vmem:[%s1082 + $0x38] sm:$0xf]
        %v1098 = vld [vmem:[%s1082 + $0x3c] sm:$0xf]
        %v1099 = vld [vmem:[%s1082 + $0x40] sm:$0xf]
        %v1100 = vld [vmem:[%s1082 + $0x44] sm:$0xf]
        %v1101 = vld [vmem:[%s1082 + $0x48] sm:$0xf]
        %v1102 = vld [vmem:[%s1082 + $0x4c] sm:$0xf]
        %v1103 = vld [vmem:[%s1082 + $0x50] sm:$0xf]
        %v1104 = vld [vmem:[%s1082 + $0x54] sm:$0xf]
        %v1105 = vld [vmem:[%s1082 + $0x58] sm:$0xf]
        %v1106 = vld [vmem:[%s1082 + $0x5c] sm:$0xf]
        %v1107 = vld [vmem:[%s1082 + $0x60] sm:$0xf]
        %v1108 = vld [vmem:[%s1082 + $0x64] sm:$0xf]
        %v1109 = vld [vmem:[%s1082 + $0x68] sm:$0xf]
        %v1110 = vld [vmem:[%s1082 + $0x6c] sm:$0xf]
        %v1111 = vld [vmem:[%s1082 + $0x70] sm:$0xf]
        %v1112 = vld [vmem:[%s1082 + $0x74] sm:$0xf]
        %v1113 = vld [vmem:[%s1082 + $0x78] sm:$0xf]
        %v1114 = vld [vmem:[%s1082 + $0x7c] sm:$0xf]
        %s1115 = scalar_lea.vmem %s2, 3
        %v1116 = vld [vmem:[%s1115] sm:$0x1]
        %1117 = vst [vmem:[#allocation2 + $0x8] sm:$0xff] %v1078
        %1118 = vst [vmem:[#allocation2 + $0x10] sm:$0xff] %v1079
        %1119 = vst [vmem:[#allocation2 + $0x20] sm:$0xff] %v1080
        %1120 = vst [vmem:[#allocation2 + $0x28] sm:$0xff] %v1081
        %v1121 = vld [vmem:[#allocation2 + $0x6] sm:$0xff]
        %v1122 = vld [vmem:[#allocation2 + $0xe] sm:$0xff]
        %v1123 = vld [vmem:[#allocation2 + $0x1e] sm:$0xff]
        %v1124 = vld [vmem:[#allocation2 + $0x26] sm:$0xff]
        %v1125 = vpack.c.bf16 %v1121, %v1121
        %v1126 = vpack.c.bf16 %v1122, %v1122
        %v1127 = vpack.c.bf16 %v1123, %v1123
        %v1128 = vpack.c.bf16 %v1124, %v1124
        %v1129 = vpack.c.bf16 %v1078, %v1078
        %v1130 = vpack.c.bf16 %v1079, %v1079
        %v1131 = vpack.c.bf16 %v1080, %v1080
        %v1132 = vpack.c.bf16 %v1081, %v1081
        %v1137 = vunpack.c.l.b16 %v1125
        %v1138 = vunpack.c.l.b16 %v1126
        %v1139 = vunpack.c.l.b16 %v1127
        %v1140 = vunpack.c.l.b16 %v1128
        %v1141 = vpack.c.b16 %v1138, %v1137
        %v1142 = vpack.c.b16 %v1140, %v1139
        %v1149 = vunpack.c.l.b16 %v1129
        %v1150 = vunpack.c.l.b16 %v1130
        %v1151 = vunpack.c.l.b16 %v1131
        %v1152 = vunpack.c.l.b16 %v1132
        %v1153 = vpack.c.b16 %v1150, %v1149
        %v1154 = vpack.c.b16 %v1152, %v1151
        %v1158 = vperm.slane %v1116, 0
        %v1192 = vunpack.c.l.b16 %v1083
        %v1193 = vunpack.c.l.b16 %v1084
        %v1194 = vunpack.c.l.b16 %v1085
        %v1195 = vunpack.c.l.b16 %v1086
        %v1196 = vunpack.c.l.b16 %v1087
        %v1197 = vunpack.c.l.b16 %v1088
        %v1198 = vunpack.c.l.b16 %v1089
        %v1199 = vunpack.c.l.b16 %v1090
        %v1200 = vunpack.c.l.b16 %v1091
        %v1201 = vunpack.c.l.b16 %v1092
        %v1202 = vunpack.c.l.b16 %v1093
        %v1203 = vunpack.c.l.b16 %v1094
        %v1204 = vunpack.c.l.b16 %v1095
        %v1205 = vunpack.c.l.b16 %v1096
        %v1206 = vunpack.c.l.b16 %v1097
        %v1207 = vunpack.c.l.b16 %v1098
        %v1208 = vunpack.c.l.b16 %v1099
        %v1209 = vunpack.c.l.b16 %v1100
        %v1210 = vunpack.c.l.b16 %v1101
        %v1211 = vunpack.c.l.b16 %v1102
        %v1212 = vunpack.c.l.b16 %v1103
        %v1213 = vunpack.c.l.b16 %v1104
        %v1214 = vunpack.c.l.b16 %v1105
        %v1215 = vunpack.c.l.b16 %v1106
        %v1216 = vunpack.c.l.b16 %v1107
        %v1217 = vunpack.c.l.b16 %v1108
        %v1218 = vunpack.c.l.b16 %v1109
        %v1219 = vunpack.c.l.b16 %v1110
        %v1220 = vunpack.c.l.b16 %v1111
        %v1221 = vunpack.c.l.b16 %v1112
        %v1222 = vunpack.c.l.b16 %v1113
        %v1223 = vunpack.c.l.b16 %v1114
        %v1224 = vpack.c.b16 %v1193, %v1192
        %v1225 = vpack.c.b16 %v1195, %v1194
        %v1226 = vpack.c.b16 %v1197, %v1196
        %v1227 = vpack.c.b16 %v1199, %v1198
        %v1228 = vpack.c.b16 %v1201, %v1200
        %v1229 = vpack.c.b16 %v1203, %v1202
        %v1230 = vpack.c.b16 %v1205, %v1204
        %v1231 = vpack.c.b16 %v1207, %v1206
        %v1232 = vpack.c.b16 %v1209, %v1208
        %v1233 = vpack.c.b16 %v1211, %v1210
        %v1234 = vpack.c.b16 %v1213, %v1212
        %v1235 = vpack.c.b16 %v1215, %v1214
        %v1236 = vpack.c.b16 %v1217, %v1216
        %v1237 = vpack.c.b16 %v1219, %v1218
        %v1238 = vpack.c.b16 %v1221, %v1220
        %v1239 = vpack.c.b16 %v1223, %v1222
        %1256 = vmatpush.bf16.msra.mxu0 %v1231
        %1257 = vmatpush.bf16.msra.mxu0 %v1230
        %1258 = vmatpush.bf16.msra.mxu0 %v1229
        %1259 = vmatpush.bf16.msra.mxu0 %v1228
        %1260 = vmatpush.bf16.msra.mxu0 %v1227
        %1261 = vmatpush.bf16.msra.mxu0 %v1226
        %1262 = vmatpush.bf16.msra.mxu0 %v1225
        %1263 = vmatpush.bf16.msra.mxu0 %v1224
        %1264 = vmatmul.bf16.gmra.mxu0 %v1141
        %v1265 = vpop.f32.mrf.mxu0
        %v1266 = vadd.f32 %v1158, %v1265
        %v1267 = vpop.f32.mrf.mxu0
        %v1268 = vadd.f32 %v1158, %v1267
        %1269 = vmatmul.bf16.gmra.mxu0 %v1142
        %v1270 = vpop.f32.mrf.mxu0
        %v1271 = vadd.f32 %v1158, %v1270
        %v1272 = vpop.f32.mrf.mxu0
        %v1273 = vadd.f32 %v1158, %v1272
        %1274 = vdwg.mxu0
        %1275 = vmatpush.bf16.msra.mxu0 %v1239
        %1276 = vmatpush.bf16.msra.mxu0 %v1238
        %1277 = vmatpush.bf16.msra.mxu0 %v1237
        %1278 = vmatpush.bf16.msra.mxu0 %v1236
        %1279 = vmatpush.bf16.msra.mxu0 %v1235
        %1280 = vmatpush.bf16.msra.mxu0 %v1234
        %1281 = vmatpush.bf16.msra.mxu0 %v1233
        %1282 = vmatpush.bf16.msra.mxu0 %v1232
        %1283 = vmatmul.bf16.gmra.mxu0 %v1153
        %v1284 = vpop.f32.mrf.mxu0
        %v1285 = vadd.f32 %v1266, %v1284
        %v1286 = vpop.f32.mrf.mxu0
        %v1287 = vadd.f32 %v1268, %v1286
        %1288 = vmatmul.bf16.gmra.mxu0 %v1154
        %v1289 = vpop.f32.mrf.mxu0
        %v1290 = vadd.f32 %v1271, %v1289
        %v1291 = vpop.f32.mrf.mxu0
        %v1292 = vadd.f32 %v1273, %v1291
        %1293 = vdwg.mxu0
        %v1294 = vmax.f32 %v1285, 0.0
        %v1295 = vmax.f32 %v1287, 0.0
        %v1296 = vmax.f32 %v1290, 0.0
        %v1297 = vmax.f32 %v1292, 0.0
        %v1298 = vadd.f32 %v1294, %v862
        %v1299 = vadd.f32 %v1295, %v863
        %v1300 = vadd.f32 %v1296, %v864
        %v1301 = vadd.f32 %v1297, %v865
        %v1302 = vmax.f32 %v1298, 0.0
        %v1303 = vmax.f32 %v1299, 0.0
        %v1304 = vmax.f32 %v1300, 0.0
        %v1305 = vmax.f32 %v1301, 0.0
        %s1306 = scalar_lea.vmem [#allocation3], 512
        %v1307 = vld [vmem:[%s1306] sm:$0xf]
        %v1308 = vld [vmem:[%s1306 + $0x4] sm:$0xf]
        %v1309 = vld [vmem:[%s1306 + $0x8] sm:$0xf]
        %v1310 = vld [vmem:[%s1306 + $0xc] sm:$0xf]
        %v1311 = vld [vmem:[%s1306 + $0x10] sm:$0xf]
        %v1312 = vld [vmem:[%s1306 + $0x14] sm:$0xf]
        %v1313 = vld [vmem:[%s1306 + $0x18] sm:$0xf]
        %v1314 = vld [vmem:[%s1306 + $0x1c] sm:$0xf]
        %v1315 = vld [vmem:[%s1306 + $0x20] sm:$0xf]
        %v1316 = vld [vmem:[%s1306 + $0x24] sm:$0xf]
        %v1317 = vld [vmem:[%s1306 + $0x28] sm:$0xf]
        %v1318 = vld [vmem:[%s1306 + $0x2c] sm:$0xf]
        %v1319 = vld [vmem:[%s1306 + $0x30] sm:$0xf]
        %v1320 = vld [vmem:[%s1306 + $0x34] sm:$0xf]
        %v1321 = vld [vmem:[%s1306 + $0x38] sm:$0xf]
        %v1322 = vld [vmem:[%s1306 + $0x3c] sm:$0xf]
        %v1323 = vld [vmem:[%s1306 + $0x40] sm:$0xf]
        %v1324 = vld [vmem:[%s1306 + $0x44] sm:$0xf]
        %v1325 = vld [vmem:[%s1306 + $0x48] sm:$0xf]
        %v1326 = vld [vmem:[%s1306 + $0x4c] sm:$0xf]
        %v1327 = vld [vmem:[%s1306 + $0x50] sm:$0xf]
        %v1328 = vld [vmem:[%s1306 + $0x54] sm:$0xf]
        %v1329 = vld [vmem:[%s1306 + $0x58] sm:$0xf]
        %v1330 = vld [vmem:[%s1306 + $0x5c] sm:$0xf]
        %v1331 = vld [vmem:[%s1306 + $0x60] sm:$0xf]
        %v1332 = vld [vmem:[%s1306 + $0x64] sm:$0xf]
        %v1333 = vld [vmem:[%s1306 + $0x68] sm:$0xf]
        %v1334 = vld [vmem:[%s1306 + $0x6c] sm:$0xf]
        %v1335 = vld [vmem:[%s1306 + $0x70] sm:$0xf]
        %v1336 = vld [vmem:[%s1306 + $0x74] sm:$0xf]
        %v1337 = vld [vmem:[%s1306 + $0x78] sm:$0xf]
        %v1338 = vld [vmem:[%s1306 + $0x7c] sm:$0xf]
        %s1339 = scalar_lea.vmem %s2, 4
        %v1340 = vld [vmem:[%s1339] sm:$0x1]
        %1341 = vst [vmem:[#allocation2 + $0x8] sm:$0xff] %v1302
        %1342 = vst [vmem:[#allocation2 + $0x10] sm:$0xff] %v1303
        %1343 = vst [vmem:[#allocation2 + $0x20] sm:$0xff] %v1304
        %1344 = vst [vmem:[#allocation2 + $0x28] sm:$0xff] %v1305
        %v1345 = vld [vmem:[#allocation2 + $0x4] sm:$0xff]
        %v1346 = vld [vmem:[#allocation2 + $0xc] sm:$0xff]
        %v1347 = vld [vmem:[#allocation2 + $0x1c] sm:$0xff]
        %v1348 = vld [vmem:[#allocation2 + $0x24] sm:$0xff]
        %v1349 = vpack.c.bf16 %v1345, %v1345
        %v1350 = vpack.c.bf16 %v1346, %v1346
        %v1351 = vpack.c.bf16 %v1347, %v1347
        %v1352 = vpack.c.bf16 %v1348, %v1348
        %v1353 = vpack.c.bf16 %v1302, %v1302
        %v1354 = vpack.c.bf16 %v1303, %v1303
        %v1355 = vpack.c.bf16 %v1304, %v1304
        %v1356 = vpack.c.bf16 %v1305, %v1305
        %v1361 = vunpack.c.l.b16 %v1349
        %v1362 = vunpack.c.l.b16 %v1350
        %v1363 = vunpack.c.l.b16 %v1351
        %v1364 = vunpack.c.l.b16 %v1352
        %v1365 = vpack.c.b16 %v1362, %v1361
        %v1366 = vpack.c.b16 %v1364, %v1363
        %v1373 = vunpack.c.l.b16 %v1353
        %v1374 = vunpack.c.l.b16 %v1354
        %v1375 = vunpack.c.l.b16 %v1355
        %v1376 = vunpack.c.l.b16 %v1356
        %v1377 = vpack.c.b16 %v1374, %v1373
        %v1378 = vpack.c.b16 %v1376, %v1375
        %v1382 = vperm.slane %v1340, 0
        %v1416 = vunpack.c.l.b16 %v1307
        %v1417 = vunpack.c.l.b16 %v1308
        %v1418 = vunpack.c.l.b16 %v1309
        %v1419 = vunpack.c.l.b16 %v1310
        %v1420 = vunpack.c.l.b16 %v1311
        %v1421 = vunpack.c.l.b16 %v1312
        %v1422 = vunpack.c.l.b16 %v1313
        %v1423 = vunpack.c.l.b16 %v1314
        %v1424 = vunpack.c.l.b16 %v1315
        %v1425 = vunpack.c.l.b16 %v1316
        %v1426 = vunpack.c.l.b16 %v1317
        %v1427 = vunpack.c.l.b16 %v1318
        %v1428 = vunpack.c.l.b16 %v1319
        %v1429 = vunpack.c.l.b16 %v1320
        %v1430 = vunpack.c.l.b16 %v1321
        %v1431 = vunpack.c.l.b16 %v1322
        %v1432 = vunpack.c.l.b16 %v1323
        %v1433 = vunpack.c.l.b16 %v1324
        %v1434 = vunpack.c.l.b16 %v1325
        %v1435 = vunpack.c.l.b16 %v1326
        %v1436 = vunpack.c.l.b16 %v1327
        %v1437 = vunpack.c.l.b16 %v1328
        %v1438 = vunpack.c.l.b16 %v1329
        %v1439 = vunpack.c.l.b16 %v1330
        %v1440 = vunpack.c.l.b16 %v1331
        %v1441 = vunpack.c.l.b16 %v1332
        %v1442 = vunpack.c.l.b16 %v1333
        %v1443 = vunpack.c.l.b16 %v1334
        %v1444 = vunpack.c.l.b16 %v1335
        %v1445 = vunpack.c.l.b16 %v1336
        %v1446 = vunpack.c.l.b16 %v1337
        %v1447 = vunpack.c.l.b16 %v1338
        %v1448 = vpack.c.b16 %v1417, %v1416
        %v1449 = vpack.c.b16 %v1419, %v1418
        %v1450 = vpack.c.b16 %v1421, %v1420
        %v1451 = vpack.c.b16 %v1423, %v1422
        %v1452 = vpack.c.b16 %v1425, %v1424
        %v1453 = vpack.c.b16 %v1427, %v1426
        %v1454 = vpack.c.b16 %v1429, %v1428
        %v1455 = vpack.c.b16 %v1431, %v1430
        %v1456 = vpack.c.b16 %v1433, %v1432
        %v1457 = vpack.c.b16 %v1435, %v1434
        %v1458 = vpack.c.b16 %v1437, %v1436
        %v1459 = vpack.c.b16 %v1439, %v1438
        %v1460 = vpack.c.b16 %v1441, %v1440
        %v1461 = vpack.c.b16 %v1443, %v1442
        %v1462 = vpack.c.b16 %v1445, %v1444
        %v1463 = vpack.c.b16 %v1447, %v1446
        %1480 = vmatpush.bf16.msra.mxu0 %v1455
        %1481 = vmatpush.bf16.msra.mxu0 %v1454
        %1482 = vmatpush.bf16.msra.mxu0 %v1453
        %1483 = vmatpush.bf16.msra.mxu0 %v1452
        %1484 = vmatpush.bf16.msra.mxu0 %v1451
        %1485 = vmatpush.bf16.msra.mxu0 %v1450
        %1486 = vmatpush.bf16.msra.mxu0 %v1449
        %1487 = vmatpush.bf16.msra.mxu0 %v1448
        %1488 = vmatmul.bf16.gmra.mxu0 %v1365
        %v1489 = vpop.f32.mrf.mxu0
        %v1490 = vadd.f32 %v1382, %v1489
        %v1491 = vpop.f32.mrf.mxu0
        %v1492 = vadd.f32 %v1382, %v1491
        %1493 = vmatmul.bf16.gmra.mxu0 %v1366
        %v1494 = vpop.f32.mrf.mxu0
        %v1495 = vadd.f32 %v1382, %v1494
        %v1496 = vpop.f32.mrf.mxu0
        %v1497 = vadd.f32 %v1382, %v1496
        %1498 = vdwg.mxu0
        %1499 = vmatpush.bf16.msra.mxu0 %v1463
        %1500 = vmatpush.bf16.msra.mxu0 %v1462
        %1501 = vmatpush.bf16.msra.mxu0 %v1461
        %1502 = vmatpush.bf16.msra.mxu0 %v1460
        %1503 = vmatpush.bf16.msra.mxu0 %v1459
        %1504 = vmatpush.bf16.msra.mxu0 %v1458
        %1505 = vmatpush.bf16.msra.mxu0 %v1457
        %1506 = vmatpush.bf16.msra.mxu0 %v1456
        %1507 = vmatmul.bf16.gmra.mxu0 %v1377
        %v1508 = vpop.f32.mrf.mxu0
        %v1509 = vadd.f32 %v1490, %v1508
        %v1510 = vpop.f32.mrf.mxu0
        %v1511 = vadd.f32 %v1492, %v1510
        %1512 = vmatmul.bf16.gmra.mxu0 %v1378
        %v1513 = vpop.f32.mrf.mxu0
        %v1514 = vadd.f32 %v1495, %v1513
        %v1515 = vpop.f32.mrf.mxu0
        %v1516 = vadd.f32 %v1497, %v1515
        %1517 = vdwg.mxu0
        %v1518 = vmax.f32 %v1509, 0.0
        %v1519 = vmax.f32 %v1511, 0.0
        %v1520 = vmax.f32 %v1514, 0.0
        %v1521 = vmax.f32 %v1516, 0.0
        %s1522 = scalar_lea.vmem [#allocation3], 640
        %v1523 = vld [vmem:[%s1522] sm:$0xf]
        %v1524 = vld [vmem:[%s1522 + $0x4] sm:$0xf]
        %v1525 = vld [vmem:[%s1522 + $0x8] sm:$0xf]
        %v1526 = vld [vmem:[%s1522 + $0xc] sm:$0xf]
        %v1527 = vld [vmem:[%s1522 + $0x10] sm:$0xf]
        %v1528 = vld [vmem:[%s1522 + $0x14] sm:$0xf]
        %v1529 = vld [vmem:[%s1522 + $0x18] sm:$0xf]
        %v1530 = vld [vmem:[%s1522 + $0x1c] sm:$0xf]
        %v1531 = vld [vmem:[%s1522 + $0x20] sm:$0xf]
        %v1532 = vld [vmem:[%s1522 + $0x24] sm:$0xf]
        %v1533 = vld [vmem:[%s1522 + $0x28] sm:$0xf]
        %v1534 = vld [vmem:[%s1522 + $0x2c] sm:$0xf]
        %v1535 = vld [vmem:[%s1522 + $0x30] sm:$0xf]
        %v1536 = vld [vmem:[%s1522 + $0x34] sm:$0xf]
        %v1537 = vld [vmem:[%s1522 + $0x38] sm:$0xf]
        %v1538 = vld [vmem:[%s1522 + $0x3c] sm:$0xf]
        %v1539 = vld [vmem:[%s1522 + $0x40] sm:$0xf]
        %v1540 = vld [vmem:[%s1522 + $0x44] sm:$0xf]
        %v1541 = vld [vmem:[%s1522 + $0x48] sm:$0xf]
        %v1542 = vld [vmem:[%s1522 + $0x4c] sm:$0xf]
        %v1543 = vld [vmem:[%s1522 + $0x50] sm:$0xf]
        %v1544 = vld [vmem:[%s1522 + $0x54] sm:$0xf]
        %v1545 = vld [vmem:[%s1522 + $0x58] sm:$0xf]
        %v1546 = vld [vmem:[%s1522 + $0x5c] sm:$0xf]
        %v1547 = vld [vmem:[%s1522 + $0x60] sm:$0xf]
        %v1548 = vld [vmem:[%s1522 + $0x64] sm:$0xf]
        %v1549 = vld [vmem:[%s1522 + $0x68] sm:$0xf]
        %v1550 = vld [vmem:[%s1522 + $0x6c] sm:$0xf]
        %v1551 = vld [vmem:[%s1522 + $0x70] sm:$0xf]
        %v1552 = vld [vmem:[%s1522 + $0x74] sm:$0xf]
        %v1553 = vld [vmem:[%s1522 + $0x78] sm:$0xf]
        %v1554 = vld [vmem:[%s1522 + $0x7c] sm:$0xf]
        %s1555 = scalar_lea.vmem %s2, 5
        %v1556 = vld [vmem:[%s1555] sm:$0x1]
        %1557 = vst [vmem:[#allocation2 + $0x8] sm:$0xff] %v1518
        %1558 = vst [vmem:[#allocation2 + $0x10] sm:$0xff] %v1519
        %1559 = vst [vmem:[#allocation2 + $0x20] sm:$0xff] %v1520
        %1560 = vst [vmem:[#allocation2 + $0x28] sm:$0xff] %v1521
        %v1561 = vld [vmem:[#allocation2 + $0x4] sm:$0xff]
        %v1562 = vld [vmem:[#allocation2 + $0xc] sm:$0xff]
        %v1563 = vld [vmem:[#allocation2 + $0x1c] sm:$0xff]
        %v1564 = vld [vmem:[#allocation2 + $0x24] sm:$0xff]
        %v1565 = vpack.c.bf16 %v1561, %v1561
        %v1566 = vpack.c.bf16 %v1562, %v1562
        %v1567 = vpack.c.bf16 %v1563, %v1563
        %v1568 = vpack.c.bf16 %v1564, %v1564
        %v1569 = vpack.c.bf16 %v1518, %v1518
        %v1570 = vpack.c.bf16 %v1519, %v1519
        %v1571 = vpack.c.bf16 %v1520, %v1520
        %v1572 = vpack.c.bf16 %v1521, %v1521
        %v1577 = vunpack.c.l.b16 %v1565
        %v1578 = vunpack.c.l.b16 %v1566
        %v1579 = vunpack.c.l.b16 %v1567
        %v1580 = vunpack.c.l.b16 %v1568
        %v1581 = vpack.c.b16 %v1578, %v1577
        %v1582 = vpack.c.b16 %v1580, %v1579
        %v1589 = vunpack.c.l.b16 %v1569
        %v1590 = vunpack.c.l.b16 %v1570
        %v1591 = vunpack.c.l.b16 %v1571
        %v1592 = vunpack.c.l.b16 %v1572
        %v1593 = vpack.c.b16 %v1590, %v1589
        %v1594 = vpack.c.b16 %v1592, %v1591
        %v1598 = vperm.slane %v1556, 0
        %v1632 = vunpack.c.l.b16 %v1523
        %v1633 = vunpack.c.l.b16 %v1524
        %v1634 = vunpack.c.l.b16 %v1525
        %v1635 = vunpack.c.l.b16 %v1526
        %v1636 = vunpack.c.l.b16 %v1527
        %v1637 = vunpack.c.l.b16 %v1528
        %v1638 = vunpack.c.l.b16 %v1529
        %v1639 = vunpack.c.l.b16 %v1530
        %v1640 = vunpack.c.l.b16 %v1531
        %v1641 = vunpack.c.l.b16 %v1532
        %v1642 = vunpack.c.l.b16 %v1533
        %v1643 = vunpack.c.l.b16 %v1534
        %v1644 = vunpack.c.l.b16 %v1535
        %v1645 = vunpack.c.l.b16 %v1536
        %v1646 = vunpack.c.l.b16 %v1537
        %v1647 = vunpack.c.l.b16 %v1538
        %v1648 = vunpack.c.l.b16 %v1539
        %v1649 = vunpack.c.l.b16 %v1540
        %v1650 = vunpack.c.l.b16 %v1541
        %v1651 = vunpack.c.l.b16 %v1542
        %v1652 = vunpack.c.l.b16 %v1543
        %v1653 = vunpack.c.l.b16 %v1544
        %v1654 = vunpack.c.l.b16 %v1545
        %v1655 = vunpack.c.l.b16 %v1546
        %v1656 = vunpack.c.l.b16 %v1547
        %v1657 = vunpack.c.l.b16 %v1548
        %v1658 = vunpack.c.l.b16 %v1549
        %v1659 = vunpack.c.l.b16 %v1550
        %v1660 = vunpack.c.l.b16 %v1551
        %v1661 = vunpack.c.l.b16 %v1552
        %v1662 = vunpack.c.l.b16 %v1553
        %v1663 = vunpack.c.l.b16 %v1554
        %v1664 = vpack.c.b16 %v1633, %v1632
        %v1665 = vpack.c.b16 %v1635, %v1634
        %v1666 = vpack.c.b16 %v1637, %v1636
        %v1667 = vpack.c.b16 %v1639, %v1638
        %v1668 = vpack.c.b16 %v1641, %v1640
        %v1669 = vpack.c.b16 %v1643, %v1642
        %v1670 = vpack.c.b16 %v1645, %v1644
        %v1671 = vpack.c.b16 %v1647, %v1646
        %v1672 = vpack.c.b16 %v1649, %v1648
        %v1673 = vpack.c.b16 %v1651, %v1650
        %v1674 = vpack.c.b16 %v1653, %v1652
        %v1675 = vpack.c.b16 %v1655, %v1654
        %v1676 = vpack.c.b16 %v1657, %v1656
        %v1677 = vpack.c.b16 %v1659, %v1658
        %v1678 = vpack.c.b16 %v1661, %v1660
        %v1679 = vpack.c.b16 %v1663, %v1662
        %1696 = vmatpush.bf16.msra.mxu0 %v1671
        %1697 = vmatpush.bf16.msra.mxu0 %v1670
        %1698 = vmatpush.bf16.msra.mxu0 %v1669
        %1699 = vmatpush.bf16.msra.mxu0 %v1668
        %1700 = vmatpush.bf16.msra.mxu0 %v1667
        %1701 = vmatpush.bf16.msra.mxu0 %v1666
        %1702 = vmatpush.bf16.msra.mxu0 %v1665
        %1703 = vmatpush.bf16.msra.mxu0 %v1664
        %1704 = vmatmul.bf16.gmra.mxu0 %v1581
        %v1705 = vpop.f32.mrf.mxu0
        %v1706 = vadd.f32 %v1598, %v1705
        %v1707 = vpop.f32.mrf.mxu0
        %v1708 = vadd.f32 %v1598, %v1707
        %1709 = vmatmul.bf16.gmra.mxu0 %v1582
        %v1710 = vpop.f32.mrf.mxu0
        %v1711 = vadd.f32 %v1598, %v1710
        %v1712 = vpop.f32.mrf.mxu0
        %v1713 = vadd.f32 %v1598, %v1712
        %1714 = vdwg.mxu0
        %1715 = vmatpush.bf16.msra.mxu0 %v1679
        %1716 = vmatpush.bf16.msra.mxu0 %v1678
        %1717 = vmatpush.bf16.msra.mxu0 %v1677
        %1718 = vmatpush.bf16.msra.mxu0 %v1676
        %1719 = vmatpush.bf16.msra.mxu0 %v1675
        %1720 = vmatpush.bf16.msra.mxu0 %v1674
        %1721 = vmatpush.bf16.msra.mxu0 %v1673
        %1722 = vmatpush.bf16.msra.mxu0 %v1672
        %1723 = vmatmul.bf16.gmra.mxu0 %v1593
        %v1724 = vpop.f32.mrf.mxu0
        %v1725 = vadd.f32 %v1706, %v1724
        %v1726 = vpop.f32.mrf.mxu0
        %v1727 = vadd.f32 %v1708, %v1726
        %1728 = vmatmul.bf16.gmra.mxu0 %v1594
        %v1729 = vpop.f32.mrf.mxu0
        %v1730 = vadd.f32 %v1711, %v1729
        %v1731 = vpop.f32.mrf.mxu0
        %v1732 = vadd.f32 %v1713, %v1731
        %1733 = vdwg.mxu0
        %v1734 = vmax.f32 %v1725, 0.0
        %v1735 = vmax.f32 %v1727, 0.0
        %v1736 = vmax.f32 %v1730, 0.0
        %v1737 = vmax.f32 %v1732, 0.0
        %v1738 = vadd.f32 %v1734, %v1302
        %v1739 = vadd.f32 %v1735, %v1303
        %v1740 = vadd.f32 %v1736, %v1304
        %v1741 = vadd.f32 %v1737, %v1305
        %v1742 = vmax.f32 %v1738, 0.0
        %v1743 = vmax.f32 %v1739, 0.0
        %v1744 = vmax.f32 %v1740, 0.0
        %v1745 = vmax.f32 %v1741, 0.0
        %s1746 = scalar_lea.vmem [#allocation3], 768
        %v1747 = vld [vmem:[%s1746] sm:$0xf]
        %v1748 = vld [vmem:[%s1746 + $0x4] sm:$0xf]
        %v1749 = vld [vmem:[%s1746 + $0x8] sm:$0xf]
        %v1750 = vld [vmem:[%s1746 + $0xc] sm:$0xf]
        %v1751 = vld [vmem:[%s1746 + $0x10] sm:$0xf]
        %v1752 = vld [vmem:[%s1746 + $0x14] sm:$0xf]
        %v1753 = vld [vmem:[%s1746 + $0x18] sm:$0xf]
        %v1754 = vld [vmem:[%s1746 + $0x1c] sm:$0xf]
        %v1755 = vld [vmem:[%s1746 + $0x20] sm:$0xf]
        %v1756 = vld [vmem:[%s1746 + $0x24] sm:$0xf]
        %v1757 = vld [vmem:[%s1746 + $0x28] sm:$0xf]
        %v1758 = vld [vmem:[%s1746 + $0x2c] sm:$0xf]
        %v1759 = vld [vmem:[%s1746 + $0x30] sm:$0xf]
        %v1760 = vld [vmem:[%s1746 + $0x34] sm:$0xf]
        %v1761 = vld [vmem:[%s1746 + $0x38] sm:$0xf]
        %v1762 = vld [vmem:[%s1746 + $0x3c] sm:$0xf]
        %v1763 = vld [vmem:[%s1746 + $0x40] sm:$0xf]
        %v1764 = vld [vmem:[%s1746 + $0x44] sm:$0xf]
        %v1765 = vld [vmem:[%s1746 + $0x48] sm:$0xf]
        %v1766 = vld [vmem:[%s1746 + $0x4c] sm:$0xf]
        %v1767 = vld [vmem:[%s1746 + $0x50] sm:$0xf]
        %v1768 = vld [vmem:[%s1746 + $0x54] sm:$0xf]
        %v1769 = vld [vmem:[%s1746 + $0x58] sm:$0xf]
        %v1770 = vld [vmem:[%s1746 + $0x5c] sm:$0xf]
        %v1771 = vld [vmem:[%s1746 + $0x60] sm:$0xf]
        %v1772 = vld [vmem:[%s1746 + $0x64] sm:$0xf]
        %v1773 = vld [vmem:[%s1746 + $0x68] sm:$0xf]
        %v1774 = vld [vmem:[%s1746 + $0x6c] sm:$0xf]
        %v1775 = vld [vmem:[%s1746 + $0x70] sm:$0xf]
        %v1776 = vld [vmem:[%s1746 + $0x74] sm:$0xf]
        %v1777 = vld [vmem:[%s1746 + $0x78] sm:$0xf]
        %v1778 = vld [vmem:[%s1746 + $0x7c] sm:$0xf]
        %s1779 = scalar_lea.vmem %s2, 6
        %v1780 = vld [vmem:[%s1779] sm:$0x1]
        %1781 = vst [vmem:[#allocation2 + $0x8] sm:$0xff] %v1742
        %1782 = vst [vmem:[#allocation2 + $0x10] sm:$0xff] %v1743
        %1783 = vst [vmem:[#allocation2 + $0x20] sm:$0xff] %v1744
        %1784 = vst [vmem:[#allocation2 + $0x28] sm:$0xff] %v1745
        %v1785 = vld [vmem:[#allocation2] sm:$0xff]
        %v1786 = vld [vmem:[#allocation2 + $0x8] sm:$0xff]
        %v1787 = vld [vmem:[#allocation2 + $0x18] sm:$0xff]
        %v1788 = vld [vmem:[#allocation2 + $0x20] sm:$0xff]
        %v1789 = vpack.c.bf16 %v1785, %v1785
        %v1790 = vpack.c.bf16 %v1786, %v1786
        %v1791 = vpack.c.bf16 %v1787, %v1787
        %v1792 = vpack.c.bf16 %v1788, %v1788
        %v1793 = vpack.c.bf16 %v1742, %v1742
        %v1794 = vpack.c.bf16 %v1743, %v1743
        %v1795 = vpack.c.bf16 %v1744, %v1744
        %v1796 = vpack.c.bf16 %v1745, %v1745
        %v1801 = vunpack.c.l.b16 %v1789
        %v1802 = vunpack.c.l.b16 %v1790
        %v1803 = vunpack.c.l.b16 %v1791
        %v1804 = vunpack.c.l.b16 %v1792
        %v1805 = vpack.c.b16 %v1802, %v1801
        %v1806 = vpack.c.b16 %v1804, %v1803
        %v1813 = vunpack.c.l.b16 %v1793
        %v1814 = vunpack.c.l.b16 %v1794
        %v1815 = vunpack.c.l.b16 %v1795
        %v1816 = vunpack.c.l.b16 %v1796
        %v1817 = vpack.c.b16 %v1814, %v1813
        %v1818 = vpack.c.b16 %v1816, %v1815
        %v1822 = vperm.slane %v1780, 0
        %v1856 = vunpack.c.l.b16 %v1747
        %v1857 = vunpack.c.l.b16 %v1748
        %v1858 = vunpack.c.l.b16 %v1749
        %v1859 = vunpack.c.l.b16 %v1750
        %v1860 = vunpack.c.l.b16 %v1751
        %v1861 = vunpack.c.l.b16 %v1752
        %v1862 = vunpack.c.l.b16 %v1753
        %v1863 = vunpack.c.l.b16 %v1754
        %v1864 = vunpack.c.l.b16 %v1755
        %v1865 = vunpack.c.l.b16 %v1756
        %v1866 = vunpack.c.l.b16 %v1757
        %v1867 = vunpack.c.l.b16 %v1758
        %v1868 = vunpack.c.l.b16 %v1759
        %v1869 = vunpack.c.l.b16 %v1760
        %v1870 = vunpack.c.l.b16 %v1761
        %v1871 = vunpack.c.l.b16 %v1762
        %v1872 = vunpack.c.l.b16 %v1763
        %v1873 = vunpack.c.l.b16 %v1764
        %v1874 = vunpack.c.l.b16 %v1765
        %v1875 = vunpack.c.l.b16 %v1766
        %v1876 = vunpack.c.l.b16 %v1767
        %v1877 = vunpack.c.l.b16 %v1768
        %v1878 = vunpack.c.l.b16 %v1769
        %v1879 = vunpack.c.l.b16 %v1770
        %v1880 = vunpack.c.l.b16 %v1771
        %v1881 = vunpack.c.l.b16 %v1772
        %v1882 = vunpack.c.l.b16 %v1773
        %v1883 = vunpack.c.l.b16 %v1774
        %v1884 = vunpack.c.l.b16 %v1775
        %v1885 = vunpack.c.l.b16 %v1776
        %v1886 = vunpack.c.l.b16 %v1777
        %v1887 = vunpack.c.l.b16 %v1778
        %v1888 = vpack.c.b16 %v1857, %v1856
        %v1889 = vpack.c.b16 %v1859, %v1858
        %v1890 = vpack.c.b16 %v1861, %v1860
        %v1891 = vpack.c.b16 %v1863, %v1862
        %v1892 = vpack.c.b16 %v1865, %v1864
        %v1893 = vpack.c.b16 %v1867, %v1866
        %v1894 = vpack.c.b16 %v1869, %v1868
        %v1895 = vpack.c.b16 %v1871, %v1870
        %v1896 = vpack.c.b16 %v1873, %v1872
        %v1897 = vpack.c.b16 %v1875, %v1874
        %v1898 = vpack.c.b16 %v1877, %v1876
        %v1899 = vpack.c.b16 %v1879, %v1878
        %v1900 = vpack.c.b16 %v1881, %v1880
        %v1901 = vpack.c.b16 %v1883, %v1882
        %v1902 = vpack.c.b16 %v1885, %v1884
        %v1903 = vpack.c.b16 %v1887, %v1886
        %1920 = vmatpush.bf16.msra.mxu0 %v1895
        %1921 = vmatpush.bf16.msra.mxu0 %v1894
        %1922 = vmatpush.bf16.msra.mxu0 %v1893
        %1923 = vmatpush.bf16.msra.mxu0 %v1892
        %1924 = vmatpush.bf16.msra.mxu0 %v1891
        %1925 = vmatpush.bf16.msra.mxu0 %v1890
        %1926 = vmatpush.bf16.msra.mxu0 %v1889
        %1927 = vmatpush.bf16.msra.mxu0 %v1888
        %1928 = vmatmul.bf16.gmra.mxu0 %v1805
        %v1929 = vpop.f32.mrf.mxu0
        %v1930 = vadd.f32 %v1822, %v1929
        %v1931 = vpop.f32.mrf.mxu0
        %v1932 = vadd.f32 %v1822, %v1931
        %1933 = vmatmul.bf16.gmra.mxu0 %v1806
        %v1934 = vpop.f32.mrf.mxu0
        %v1935 = vadd.f32 %v1822, %v1934
        %v1936 = vpop.f32.mrf.mxu0
        %v1937 = vadd.f32 %v1822, %v1936
        %1938 = vdwg.mxu0
        %1939 = vmatpush.bf16.msra.mxu0 %v1903
        %1940 = vmatpush.bf16.msra.mxu0 %v1902
        %1941 = vmatpush.bf16.msra.mxu0 %v1901
        %1942 = vmatpush.bf16.msra.mxu0 %v1900
        %1943 = vmatpush.bf16.msra.mxu0 %v1899
        %1944 = vmatpush.bf16.msra.mxu0 %v1898
        %1945 = vmatpush.bf16.msra.mxu0 %v1897
        %1946 = vmatpush.bf16.msra.mxu0 %v1896
        %1947 = vmatmul.bf16.gmra.mxu0 %v1817
        %v1948 = vpop.f32.mrf.mxu0
        %v1949 = vadd.f32 %v1930, %v1948
        %v1950 = vpop.f32.mrf.mxu0
        %v1951 = vadd.f32 %v1932, %v1950
        %1952 = vmatmul.bf16.gmra.mxu0 %v1818
        %v1953 = vpop.f32.mrf.mxu0
        %v1954 = vadd.f32 %v1935, %v1953
        %v1955 = vpop.f32.mrf.mxu0
        %v1956 = vadd.f32 %v1937, %v1955
        %1957 = vdwg.mxu0
        %v1958 = vmax.f32 %v1949, 0.0
        %v1959 = vmax.f32 %v1951, 0.0
        %v1960 = vmax.f32 %v1954, 0.0
        %v1961 = vmax.f32 %v1956, 0.0
        %s1962 = scalar_lea.vmem [#allocation3], 896
        %v1963 = vld [vmem:[%s1962] sm:$0xf]
        %v1964 = vld [vmem:[%s1962 + $0x4] sm:$0xf]
        %v1965 = vld [vmem:[%s1962 + $0x8] sm:$0xf]
        %v1966 = vld [vmem:[%s1962 + $0xc] sm:$0xf]
        %v1967 = vld [vmem:[%s1962 + $0x10] sm:$0xf]
        %v1968 = vld [vmem:[%s1962 + $0x14] sm:$0xf]
        %v1969 = vld [vmem:[%s1962 + $0x18] sm:$0xf]
        %v1970 = vld [vmem:[%s1962 + $0x1c] sm:$0xf]
        %v1971 = vld [vmem:[%s1962 + $0x20] sm:$0xf]
        %v1972 = vld [vmem:[%s1962 + $0x24] sm:$0xf]
        %v1973 = vld [vmem:[%s1962 + $0x28] sm:$0xf]
        %v1974 = vld [vmem:[%s1962 + $0x2c] sm:$0xf]
        %v1975 = vld [vmem:[%s1962 + $0x30] sm:$0xf]
        %v1976 = vld [vmem:[%s1962 + $0x34] sm:$0xf]
        %v1977 = vld [vmem:[%s1962 + $0x38] sm:$0xf]
        %v1978 = vld [vmem:[%s1962 + $0x3c] sm:$0xf]
        %v1979 = vld [vmem:[%s1962 + $0x40] sm:$0xf]
        %v1980 = vld [vmem:[%s1962 + $0x44] sm:$0xf]
        %v1981 = vld [vmem:[%s1962 + $0x48] sm:$0xf]
        %v1982 = vld [vmem:[%s1962 + $0x4c] sm:$0xf]
        %v1983 = vld [vmem:[%s1962 + $0x50] sm:$0xf]
        %v1984 = vld [vmem:[%s1962 + $0x54] sm:$0xf]
        %v1985 = vld [vmem:[%s1962 + $0x58] sm:$0xf]
        %v1986 = vld [vmem:[%s1962 + $0x5c] sm:$0xf]
        %v1987 = vld [vmem:[%s1962 + $0x60] sm:$0xf]
        %v1988 = vld [vmem:[%s1962 + $0x64] sm:$0xf]
        %v1989 = vld [vmem:[%s1962 + $0x68] sm:$0xf]
        %v1990 = vld [vmem:[%s1962 + $0x6c] sm:$0xf]
        %v1991 = vld [vmem:[%s1962 + $0x70] sm:$0xf]
        %v1992 = vld [vmem:[%s1962 + $0x74] sm:$0xf]
        %v1993 = vld [vmem:[%s1962 + $0x78] sm:$0xf]
        %v1994 = vld [vmem:[%s1962 + $0x7c] sm:$0xf]
        %s1995 = scalar_lea.vmem %s2, 7
        %v1996 = vld [vmem:[%s1995] sm:$0x1]
        %1997 = vst [vmem:[#allocation2 + $0x8] sm:$0xff] %v1958
        %1998 = vst [vmem:[#allocation2 + $0x10] sm:$0xff] %v1959
        %1999 = vst [vmem:[#allocation2 + $0x20] sm:$0xff] %v1960
        %2000 = vst [vmem:[#allocation2 + $0x28] sm:$0xff] %v1961
        %v2001 = vld [vmem:[#allocation2] sm:$0xff]
        %v2002 = vld [vmem:[#allocation2 + $0x8] sm:$0xff]
        %v2003 = vld [vmem:[#allocation2 + $0x18] sm:$0xff]
        %v2004 = vld [vmem:[#allocation2 + $0x20] sm:$0xff]
        %v2005 = vpack.c.bf16 %v2001, %v2001
        %v2006 = vpack.c.bf16 %v2002, %v2002
        %v2007 = vpack.c.bf16 %v2003, %v2003
        %v2008 = vpack.c.bf16 %v2004, %v2004
        %v2009 = vpack.c.bf16 %v1958, %v1958
        %v2010 = vpack.c.bf16 %v1959, %v1959
        %v2011 = vpack.c.bf16 %v1960, %v1960
        %v2012 = vpack.c.bf16 %v1961, %v1961
        %v2017 = vunpack.c.l.b16 %v2005
        %v2018 = vunpack.c.l.b16 %v2006
        %v2019 = vunpack.c.l.b16 %v2007
        %v2020 = vunpack.c.l.b16 %v2008
        %v2021 = vpack.c.b16 %v2018, %v2017
        %v2022 = vpack.c.b16 %v2020, %v2019
        %v2029 = vunpack.c.l.b16 %v2009
        %v2030 = vunpack.c.l.b16 %v2010
        %v2031 = vunpack.c.l.b16 %v2011
        %v2032 = vunpack.c.l.b16 %v2012
        %v2033 = vpack.c.b16 %v2030, %v2029
        %v2034 = vpack.c.b16 %v2032, %v2031
        %v2038 = vperm.slane %v1996, 0
        %v2072 = vunpack.c.l.b16 %v1963
        %v2073 = vunpack.c.l.b16 %v1964
        %v2074 = vunpack.c.l.b16 %v1965
        %v2075 = vunpack.c.l.b16 %v1966
        %v2076 = vunpack.c.l.b16 %v1967
        %v2077 = vunpack.c.l.b16 %v1968
        %v2078 = vunpack.c.l.b16 %v1969
        %v2079 = vunpack.c.l.b16 %v1970
        %v2080 = vunpack.c.l.b16 %v1971
        %v2081 = vunpack.c.l.b16 %v1972
        %v2082 = vunpack.c.l.b16 %v1973
        %v2083 = vunpack.c.l.b16 %v1974
        %v2084 = vunpack.c.l.b16 %v1975
        %v2085 = vunpack.c.l.b16 %v1976
        %v2086 = vunpack.c.l.b16 %v1977
        %v2087 = vunpack.c.l.b16 %v1978
        %v2088 = vunpack.c.l.b16 %v1979
        %v2089 = vunpack.c.l.b16 %v1980
        %v2090 = vunpack.c.l.b16 %v1981
        %v2091 = vunpack.c.l.b16 %v1982
        %v2092 = vunpack.c.l.b16 %v1983
        %v2093 = vunpack.c.l.b16 %v1984
        %v2094 = vunpack.c.l.b16 %v1985
        %v2095 = vunpack.c.l.b16 %v1986
        %v2096 = vunpack.c.l.b16 %v1987
        %v2097 = vunpack.c.l.b16 %v1988
        %v2098 = vunpack.c.l.b16 %v1989
        %v2099 = vunpack.c.l.b16 %v1990
        %v2100 = vunpack.c.l.b16 %v1991
        %v2101 = vunpack.c.l.b16 %v1992
        %v2102 = vunpack.c.l.b16 %v1993
        %v2103 = vunpack.c.l.b16 %v1994
        %v2104 = vpack.c.b16 %v2073, %v2072
        %v2105 = vpack.c.b16 %v2075, %v2074
        %v2106 = vpack.c.b16 %v2077, %v2076
        %v2107 = vpack.c.b16 %v2079, %v2078
        %v2108 = vpack.c.b16 %v2081, %v2080
        %v2109 = vpack.c.b16 %v2083, %v2082
        %v2110 = vpack.c.b16 %v2085, %v2084
        %v2111 = vpack.c.b16 %v2087, %v2086
        %v2112 = vpack.c.b16 %v2089, %v2088
        %v2113 = vpack.c.b16 %v2091, %v2090
        %v2114 = vpack.c.b16 %v2093, %v2092
        %v2115 = vpack.c.b16 %v2095, %v2094
        %v2116 = vpack.c.b16 %v2097, %v2096
        %v2117 = vpack.c.b16 %v2099, %v2098
        %v2118 = vpack.c.b16 %v2101, %v2100
        %v2119 = vpack.c.b16 %v2103, %v2102
        %2136 = vmatpush.bf16.msra.mxu0 %v2111
        %2137 = vmatpush.bf16.msra.mxu0 %v2110
        %2138 = vmatpush.bf16.msra.mxu0 %v2109
        %2139 = vmatpush.bf16.msra.mxu0 %v2108
        %2140 = vmatpush.bf16.msra.mxu0 %v2107
        %2141 = vmatpush.bf16.msra.mxu0 %v2106
        %2142 = vmatpush.bf16.msra.mxu0 %v2105
        %2143 = vmatpush.bf16.msra.mxu0 %v2104
        %2144 = vmatmul.bf16.gmra.mxu0 %v2021
        %v2145 = vpop.f32.mrf.mxu0
        %v2146 = vadd.f32 %v2038, %v2145
        %v2147 = vpop.f32.mrf.mxu0
        %v2148 = vadd.f32 %v2038, %v2147
        %2149 = vmatmul.bf16.gmra.mxu0 %v2022
        %v2150 = vpop.f32.mrf.mxu0
        %v2151 = vadd.f32 %v2038, %v2150
        %v2152 = vpop.f32.mrf.mxu0
        %v2153 = vadd.f32 %v2038, %v2152
        %2154 = vdwg.mxu0
        %2155 = vmatpush.bf16.msra.mxu0 %v2119
        %2156 = vmatpush.bf16.msra.mxu0 %v2118
        %2157 = vmatpush.bf16.msra.mxu0 %v2117
        %2158 = vmatpush.bf16.msra.mxu0 %v2116
        %2159 = vmatpush.bf16.msra.mxu0 %v2115
        %2160 = vmatpush.bf16.msra.mxu0 %v2114
        %2161 = vmatpush.bf16.msra.mxu0 %v2113
        %2162 = vmatpush.bf16.msra.mxu0 %v2112
        %2163 = vmatmul.bf16.gmra.mxu0 %v2033
        %v2164 = vpop.f32.mrf.mxu0
        %v2165 = vadd.f32 %v2146, %v2164
        %v2166 = vpop.f32.mrf.mxu0
        %v2167 = vadd.f32 %v2148, %v2166
        %2168 = vmatmul.bf16.gmra.mxu0 %v2034
        %v2169 = vpop.f32.mrf.mxu0
        %v2170 = vadd.f32 %v2151, %v2169
        %v2171 = vpop.f32.mrf.mxu0
        %v2172 = vadd.f32 %v2153, %v2171
        %2173 = vdwg.mxu0
        %v2174 = vmax.f32 %v2165, 0.0
        %v2175 = vmax.f32 %v2167, 0.0
        %v2176 = vmax.f32 %v2170, 0.0
        %v2177 = vmax.f32 %v2172, 0.0
        %v2178 = vadd.f32 %v2174, %v1742
        %v2179 = vadd.f32 %v2175, %v1743
        %v2180 = vadd.f32 %v2176, %v1744
        %v2181 = vadd.f32 %v2177, %v1745
        %v2182 = vmax.f32 %v2178, 0.0
        %v2183 = vmax.f32 %v2179, 0.0
        %v2184 = vmax.f32 %v2180, 0.0
        %v2185 = vmax.f32 %v2181, 0.0
        %s2186 = scalar_lea.vmem [#allocation3], 1024
        %v2187 = vld [vmem:[%s2186] sm:$0xf]
        %v2188 = vld [vmem:[%s2186 + $0x4] sm:$0xf]
        %v2189 = vld [vmem:[%s2186 + $0x8] sm:$0xf]
        %v2190 = vld [vmem:[%s2186 + $0xc] sm:$0xf]
        %v2191 = vld [vmem:[%s2186 + $0x10] sm:$0xf]
        %v2192 = vld [vmem:[%s2186 + $0x14] sm:$0xf]
        %v2193 = vld [vmem:[%s2186 + $0x18] sm:$0xf]
        %v2194 = vld [vmem:[%s2186 + $0x1c] sm:$0xf]
        %v2195 = vld [vmem:[%s2186 + $0x20] sm:$0xf]
        %v2196 = vld [vmem:[%s2186 + $0x24] sm:$0xf]
        %v2197 = vld [vmem:[%s2186 + $0x28] sm:$0xf]
        %v2198 = vld [vmem:[%s2186 + $0x2c] sm:$0xf]
        %v2199 = vld [vmem:[%s2186 + $0x30] sm:$0xf]
        %v2200 = vld [vmem:[%s2186 + $0x34] sm:$0xf]
        %v2201 = vld [vmem:[%s2186 + $0x38] sm:$0xf]
        %v2202 = vld [vmem:[%s2186 + $0x3c] sm:$0xf]
        %v2203 = vld [vmem:[%s2186 + $0x40] sm:$0xf]
        %v2204 = vld [vmem:[%s2186 + $0x44] sm:$0xf]
        %v2205 = vld [vmem:[%s2186 + $0x48] sm:$0xf]
        %v2206 = vld [vmem:[%s2186 + $0x4c] sm:$0xf]
        %v2207 = vld [vmem:[%s2186 + $0x50] sm:$0xf]
        %v2208 = vld [vmem:[%s2186 + $0x54] sm:$0xf]
        %v2209 = vld [vmem:[%s2186 + $0x58] sm:$0xf]
        %v2210 = vld [vmem:[%s2186 + $0x5c] sm:$0xf]
        %v2211 = vld [vmem:[%s2186 + $0x60] sm:$0xf]
        %v2212 = vld [vmem:[%s2186 + $0x64] sm:$0xf]
        %v2213 = vld [vmem:[%s2186 + $0x68] sm:$0xf]
        %v2214 = vld [vmem:[%s2186 + $0x6c] sm:$0xf]
        %v2215 = vld [vmem:[%s2186 + $0x70] sm:$0xf]
        %v2216 = vld [vmem:[%s2186 + $0x74] sm:$0xf]
        %v2217 = vld [vmem:[%s2186 + $0x78] sm:$0xf]
        %v2218 = vld [vmem:[%s2186 + $0x7c] sm:$0xf]
        %s2219 = scalar_lea.vmem %s2, 8
        %v2220 = vld [vmem:[%s2219] sm:$0x1]
        %v2221 = vpack.c.bf16 %v2182, %v2182
        %v2222 = vpack.c.bf16 %v2183, %v2183
        %v2223 = vpack.c.bf16 %v2184, %v2184
        %v2224 = vpack.c.bf16 %v2185, %v2185
        %v2229 = vunpack.c.l.b16 %v2221
        %v2230 = vunpack.c.l.b16 %v2222
        %v2231 = vunpack.c.l.b16 %v2223
        %v2232 = vunpack.c.l.b16 %v2224
        %v2233 = vpack.c.b16 %v2230, %v2229
        %v2234 = vpack.c.b16 %v2232, %v2231
        %v2238 = vperm.slane %v2220, 0
        %v2272 = vunpack.c.l.b16 %v2187
        %v2273 = vunpack.c.l.b16 %v2188
        %v2274 = vunpack.c.l.b16 %v2189
        %v2275 = vunpack.c.l.b16 %v2190
        %v2276 = vunpack.c.l.b16 %v2191
        %v2277 = vunpack.c.l.b16 %v2192
        %v2278 = vunpack.c.l.b16 %v2193
        %v2279 = vunpack.c.l.b16 %v2194
        %v2280 = vunpack.c.l.b16 %v2195
        %v2281 = vunpack.c.l.b16 %v2196
        %v2282 = vunpack.c.l.b16 %v2197
        %v2283 = vunpack.c.l.b16 %v2198
        %v2284 = vunpack.c.l.b16 %v2199
        %v2285 = vunpack.c.l.b16 %v2200
        %v2286 = vunpack.c.l.b16 %v2201
        %v2287 = vunpack.c.l.b16 %v2202
        %v2288 = vunpack.c.l.b16 %v2203
        %v2289 = vunpack.c.l.b16 %v2204
        %v2290 = vunpack.c.l.b16 %v2205
        %v2291 = vunpack.c.l.b16 %v2206
        %v2292 = vunpack.c.l.b16 %v2207
        %v2293 = vunpack.c.l.b16 %v2208
        %v2294 = vunpack.c.l.b16 %v2209
        %v2295 = vunpack.c.l.b16 %v2210
        %v2296 = vunpack.c.l.b16 %v2211
        %v2297 = vunpack.c.l.b16 %v2212
        %v2298 = vunpack.c.l.b16 %v2213
        %v2299 = vunpack.c.l.b16 %v2214
        %v2300 = vunpack.c.l.b16 %v2215
        %v2301 = vunpack.c.l.b16 %v2216
        %v2302 = vunpack.c.l.b16 %v2217
        %v2303 = vunpack.c.l.b16 %v2218
        %v2304 = vpack.c.b16 %v2273, %v2272
        %v2305 = vpack.c.b16 %v2275, %v2274
        %v2306 = vpack.c.b16 %v2277, %v2276
        %v2307 = vpack.c.b16 %v2279, %v2278
        %v2308 = vpack.c.b16 %v2281, %v2280
        %v2309 = vpack.c.b16 %v2283, %v2282
        %v2310 = vpack.c.b16 %v2285, %v2284
        %v2311 = vpack.c.b16 %v2287, %v2286
        %v2312 = vpack.c.b16 %v2289, %v2288
        %v2313 = vpack.c.b16 %v2291, %v2290
        %v2314 = vpack.c.b16 %v2293, %v2292
        %v2315 = vpack.c.b16 %v2295, %v2294
        %v2316 = vpack.c.b16 %v2297, %v2296
        %v2317 = vpack.c.b16 %v2299, %v2298
        %v2318 = vpack.c.b16 %v2301, %v2300
        %v2319 = vpack.c.b16 %v2303, %v2302
        %2336 = vmatpush.bf16.msra.mxu0 %v2311
        %2337 = vmatpush.bf16.msra.mxu0 %v2310
        %2338 = vmatpush.bf16.msra.mxu0 %v2309
        %2339 = vmatpush.bf16.msra.mxu0 %v2308
        %2340 = vmatpush.bf16.msra.mxu0 %v2307
        %2341 = vmatpush.bf16.msra.mxu0 %v2306
        %2342 = vmatpush.bf16.msra.mxu0 %v2305
        %2343 = vmatpush.bf16.msra.mxu0 %v2304
        %2344 = vmatmul.bf16.gmra.mxu0 0
        %v2345 = vpop.f32.mrf.mxu0
        %v2346 = vadd.f32 %v2238, %v2345
        %v2347 = vpop.f32.mrf.mxu0
        %v2348 = vadd.f32 %v2238, %v2347
        %2349 = vmatmul.bf16.gmra.mxu0 0
        %v2350 = vpop.f32.mrf.mxu0
        %v2351 = vadd.f32 %v2238, %v2350
        %v2352 = vpop.f32.mrf.mxu0
        %v2353 = vadd.f32 %v2238, %v2352
        %2354 = vdwg.mxu0
        %2355 = vmatpush.bf16.msra.mxu0 %v2319
        %2356 = vmatpush.bf16.msra.mxu0 %v2318
        %2357 = vmatpush.bf16.msra.mxu0 %v2317
        %2358 = vmatpush.bf16.msra.mxu0 %v2316
        %2359 = vmatpush.bf16.msra.mxu0 %v2315
        %2360 = vmatpush.bf16.msra.mxu0 %v2314
        %2361 = vmatpush.bf16.msra.mxu0 %v2313
        %2362 = vmatpush.bf16.msra.mxu0 %v2312
        %2363 = vmatmul.bf16.gmra.mxu0 %v2233
        %v2364 = vpop.f32.mrf.mxu0
        %v2365 = vadd.f32 %v2346, %v2364
        %v2366 = vpop.f32.mrf.mxu0
        %v2367 = vadd.f32 %v2348, %v2366
        %2368 = vmatmul.bf16.gmra.mxu0 %v2234
        %v2369 = vpop.f32.mrf.mxu0
        %v2370 = vadd.f32 %v2351, %v2369
        %v2371 = vpop.f32.mrf.mxu0
        %v2372 = vadd.f32 %v2353, %v2371
        %2373 = vdwg.mxu0
        %v2374 = vmax.f32 %v2365, 0.0
        %v2375 = vmax.f32 %v2367, 0.0
        %v2376 = vmax.f32 %v2370, 0.0
        %v2377 = vmax.f32 %v2372, 0.0
        %s2378 = scalar_lea.vmem [#allocation3], 1152
        %v2379 = vld [vmem:[%s2378] sm:$0xf]
        %v2380 = vld [vmem:[%s2378 + $0x4] sm:$0xf]
        %v2381 = vld [vmem:[%s2378 + $0x8] sm:$0xf]
        %v2382 = vld [vmem:[%s2378 + $0xc] sm:$0xf]
        %v2383 = vld [vmem:[%s2378 + $0x10] sm:$0xf]
        %v2384 = vld [vmem:[%s2378 + $0x14] sm:$0xf]
        %v2385 = vld [vmem:[%s2378 + $0x18] sm:$0xf]
        %v2386 = vld [vmem:[%s2378 + $0x1c] sm:$0xf]
        %v2387 = vld [vmem:[%s2378 + $0x20] sm:$0xf]
        %v2388 = vld [vmem:[%s2378 + $0x24] sm:$0xf]
        %v2389 = vld [vmem:[%s2378 + $0x28] sm:$0xf]
        %v2390 = vld [vmem:[%s2378 + $0x2c] sm:$0xf]
        %v2391 = vld [vmem:[%s2378 + $0x30] sm:$0xf]
        %v2392 = vld [vmem:[%s2378 + $0x34] sm:$0xf]
        %v2393 = vld [vmem:[%s2378 + $0x38] sm:$0xf]
        %v2394 = vld [vmem:[%s2378 + $0x3c] sm:$0xf]
        %v2395 = vld [vmem:[%s2378 + $0x40] sm:$0xf]
        %v2396 = vld [vmem:[%s2378 + $0x44] sm:$0xf]
        %v2397 = vld [vmem:[%s2378 + $0x48] sm:$0xf]
        %v2398 = vld [vmem:[%s2378 + $0x4c] sm:$0xf]
        %v2399 = vld [vmem:[%s2378 + $0x50] sm:$0xf]
        %v2400 = vld [vmem:[%s2378 + $0x54] sm:$0xf]
        %v2401 = vld [vmem:[%s2378 + $0x58] sm:$0xf]
        %v2402 = vld [vmem:[%s2378 + $0x5c] sm:$0xf]
        %v2403 = vld [vmem:[%s2378 + $0x60] sm:$0xf]
        %v2404 = vld [vmem:[%s2378 + $0x64] sm:$0xf]
        %v2405 = vld [vmem:[%s2378 + $0x68] sm:$0xf]
        %v2406 = vld [vmem:[%s2378 + $0x6c] sm:$0xf]
        %v2407 = vld [vmem:[%s2378 + $0x70] sm:$0xf]
        %v2408 = vld [vmem:[%s2378 + $0x74] sm:$0xf]
        %v2409 = vld [vmem:[%s2378 + $0x78] sm:$0xf]
        %v2410 = vld [vmem:[%s2378 + $0x7c] sm:$0xf]
        %s2411 = scalar_lea.vmem %s2, 9
        %v2412 = vld [vmem:[%s2411] sm:$0x1]
        %v2413 = vpack.c.bf16 %v2374, %v2374
        %v2414 = vpack.c.bf16 %v2375, %v2375
        %v2415 = vpack.c.bf16 %v2376, %v2376
        %v2416 = vpack.c.bf16 %v2377, %v2377
        %v2421 = vunpack.c.l.b16 %v2413
        %v2422 = vunpack.c.l.b16 %v2414
        %v2423 = vunpack.c.l.b16 %v2415
        %v2424 = vunpack.c.l.b16 %v2416
        %v2425 = vpack.c.b16 %v2422, %v2421
        %v2426 = vpack.c.b16 %v2424, %v2423
        %v2430 = vperm.slane %v2412, 0
        %v2464 = vunpack.c.l.b16 %v2379
        %v2465 = vunpack.c.l.b16 %v2380
        %v2466 = vunpack.c.l.b16 %v2381
        %v2467 = vunpack.c.l.b16 %v2382
        %v2468 = vunpack.c.l.b16 %v2383
        %v2469 = vunpack.c.l.b16 %v2384
        %v2470 = vunpack.c.l.b16 %v2385
        %v2471 = vunpack.c.l.b16 %v2386
        %v2472 = vunpack.c.l.b16 %v2387
        %v2473 = vunpack.c.l.b16 %v2388
        %v2474 = vunpack.c.l.b16 %v2389
        %v2475 = vunpack.c.l.b16 %v2390
        %v2476 = vunpack.c.l.b16 %v2391
        %v2477 = vunpack.c.l.b16 %v2392
        %v2478 = vunpack.c.l.b16 %v2393
        %v2479 = vunpack.c.l.b16 %v2394
        %v2480 = vunpack.c.l.b16 %v2395
        %v2481 = vunpack.c.l.b16 %v2396
        %v2482 = vunpack.c.l.b16 %v2397
        %v2483 = vunpack.c.l.b16 %v2398
        %v2484 = vunpack.c.l.b16 %v2399
        %v2485 = vunpack.c.l.b16 %v2400
        %v2486 = vunpack.c.l.b16 %v2401
        %v2487 = vunpack.c.l.b16 %v2402
        %v2488 = vunpack.c.l.b16 %v2403
        %v2489 = vunpack.c.l.b16 %v2404
        %v2490 = vunpack.c.l.b16 %v2405
        %v2491 = vunpack.c.l.b16 %v2406
        %v2492 = vunpack.c.l.b16 %v2407
        %v2493 = vunpack.c.l.b16 %v2408
        %v2494 = vunpack.c.l.b16 %v2409
        %v2495 = vunpack.c.l.b16 %v2410
        %v2496 = vpack.c.b16 %v2465, %v2464
        %v2497 = vpack.c.b16 %v2467, %v2466
        %v2498 = vpack.c.b16 %v2469, %v2468
        %v2499 = vpack.c.b16 %v2471, %v2470
        %v2500 = vpack.c.b16 %v2473, %v2472
        %v2501 = vpack.c.b16 %v2475, %v2474
        %v2502 = vpack.c.b16 %v2477, %v2476
        %v2503 = vpack.c.b16 %v2479, %v2478
        %v2504 = vpack.c.b16 %v2481, %v2480
        %v2505 = vpack.c.b16 %v2483, %v2482
        %v2506 = vpack.c.b16 %v2485, %v2484
        %v2507 = vpack.c.b16 %v2487, %v2486
        %v2508 = vpack.c.b16 %v2489, %v2488
        %v2509 = vpack.c.b16 %v2491, %v2490
        %v2510 = vpack.c.b16 %v2493, %v2492
        %v2511 = vpack.c.b16 %v2495, %v2494
        %2528 = vmatpush.bf16.msra.mxu0 %v2503
        %2529 = vmatpush.bf16.msra.mxu0 %v2502
        %2530 = vmatpush.bf16.msra.mxu0 %v2501
        %2531 = vmatpush.bf16.msra.mxu0 %v2500
        %2532 = vmatpush.bf16.msra.mxu0 %v2499
        %2533 = vmatpush.bf16.msra.mxu0 %v2498
        %2534 = vmatpush.bf16.msra.mxu0 %v2497
        %2535 = vmatpush.bf16.msra.mxu0 %v2496
        %2536 = vmatmul.bf16.gmra.mxu0 0
        %v2537 = vpop.f32.mrf.mxu0
        %v2538 = vadd.f32 %v2430, %v2537
        %v2539 = vpop.f32.mrf.mxu0
        %v2540 = vadd.f32 %v2430, %v2539
        %2541 = vmatmul.bf16.gmra.mxu0 0
        %v2542 = vpop.f32.mrf.mxu0
        %v2543 = vadd.f32 %v2430, %v2542
        %v2544 = vpop.f32.mrf.mxu0
        %v2545 = vadd.f32 %v2430, %v2544
        %2546 = vdwg.mxu0
        %2547 = vmatpush.bf16.msra.mxu0 %v2511
        %2548 = vmatpush.bf16.msra.mxu0 %v2510
        %2549 = vmatpush.bf16.msra.mxu0 %v2509
        %2550 = vmatpush.bf16.msra.mxu0 %v2508
        %2551 = vmatpush.bf16.msra.mxu0 %v2507
        %2552 = vmatpush.bf16.msra.mxu0 %v2506
        %2553 = vmatpush.bf16.msra.mxu0 %v2505
        %2554 = vmatpush.bf16.msra.mxu0 %v2504
        %2555 = vmatmul.bf16.gmra.mxu0 %v2425
        %v2556 = vpop.f32.mrf.mxu0
        %v2557 = vadd.f32 %v2538, %v2556
        %v2558 = vpop.f32.mrf.mxu0
        %v2559 = vadd.f32 %v2540, %v2558
        %2560 = vmatmul.bf16.gmra.mxu0 %v2426
        %v2561 = vpop.f32.mrf.mxu0
        %v2562 = vadd.f32 %v2543, %v2561
        %v2563 = vpop.f32.mrf.mxu0
        %v2564 = vadd.f32 %v2545, %v2563
        %2565 = vdwg.mxu0
        %v2566 = vmax.f32 %v2557, 0.0
        %v2567 = vmax.f32 %v2559, 0.0
        %v2568 = vmax.f32 %v2562, 0.0
        %v2569 = vmax.f32 %v2564, 0.0
        %v2570 = vadd.f32 %v2566, %v2182
        %v2571 = vadd.f32 %v2567, %v2183
        %v2572 = vadd.f32 %v2568, %v2184
        %v2573 = vadd.f32 %v2569, %v2185
        %v2574 = vmax.f32 %v2570, 0.0
        %v2575 = vmax.f32 %v2571, 0.0
        %v2576 = vmax.f32 %v2572, 0.0
        %v2577 = vmax.f32 %v2573, 0.0
        %v2578 = vtanh.pop %v2574
        %v2579 = vtanh.pop %v2575
        %v2580 = vtanh.pop %v2576
        %v2581 = vtanh.pop %v2577
        %v2582 = vpack.c.bf16 %v2579, %v2578
        %v2583 = vpack.c.bf16 %v2581, %v2580
        %v2584 = vld [vmem:[#allocation5] sm:$0xf]
        %v2585 = vld [vmem:[#allocation5 + $0x4] sm:$0xf]
        %v2586 = vld [vmem:[#allocation5 + $0x8] sm:$0xf]
        %v2587 = vld [vmem:[#allocation5 + $0xc] sm:$0xf]
        %v2588 = vld [vmem:[#allocation5 + $0x10] sm:$0xf]
        %v2589 = vld [vmem:[#allocation5 + $0x14] sm:$0xf]
        %v2590 = vld [vmem:[#allocation5 + $0x18] sm:$0xf]
        %v2591 = vld [vmem:[#allocation5 + $0x1c] sm:$0xf]
        %v2592 = vld [vmem:[#allocation5 + $0x20] sm:$0xf]
        %v2593 = vld [vmem:[#allocation5 + $0x24] sm:$0xf]
        %v2594 = vld [vmem:[#allocation5 + $0x28] sm:$0xf]
        %v2595 = vld [vmem:[#allocation5 + $0x2c] sm:$0xf]
        %v2596 = vld [vmem:[#allocation5 + $0x30] sm:$0xf]
        %v2597 = vld [vmem:[#allocation5 + $0x34] sm:$0xf]
        %v2598 = vld [vmem:[#allocation5 + $0x38] sm:$0xf]
        %v2599 = vld [vmem:[#allocation5 + $0x3c] sm:$0xf]
        %v2600 = vld [vmem:[%s6] sm:$0x1]
        %v2602 = vperm.slane %v2600, 0
        %v2620 = vunpack.c.l.b16 %v2584
        %v2621 = vunpack.c.l.b16 %v2585
        %v2622 = vunpack.c.l.b16 %v2586
        %v2623 = vunpack.c.l.b16 %v2587
        %v2624 = vunpack.c.l.b16 %v2588
        %v2625 = vunpack.c.l.b16 %v2589
        %v2626 = vunpack.c.l.b16 %v2590
        %v2627 = vunpack.c.l.b16 %v2591
        %v2628 = vunpack.c.l.b16 %v2592
        %v2629 = vunpack.c.l.b16 %v2593
        %v2630 = vunpack.c.l.b16 %v2594
        %v2631 = vunpack.c.l.b16 %v2595
        %v2632 = vunpack.c.l.b16 %v2596
        %v2633 = vunpack.c.l.b16 %v2597
        %v2634 = vunpack.c.l.b16 %v2598
        %v2635 = vunpack.c.l.b16 %v2599
        %v2636 = vpack.c.b16 %v2621, %v2620
        %v2637 = vpack.c.b16 %v2623, %v2622
        %v2638 = vpack.c.b16 %v2625, %v2624
        %v2639 = vpack.c.b16 %v2627, %v2626
        %v2640 = vpack.c.b16 %v2629, %v2628
        %v2641 = vpack.c.b16 %v2631, %v2630
        %v2642 = vpack.c.b16 %v2633, %v2632
        %v2643 = vpack.c.b16 %v2635, %v2634
        %2652 = vmatpush.bf16.msra.mxu0 %v2643
        %2653 = vmatpush.bf16.msra.mxu0 %v2642
        %2654 = vmatpush.bf16.msra.mxu0 %v2641
        %2655 = vmatpush.bf16.msra.mxu0 %v2640
        %2656 = vmatpush.bf16.msra.mxu0 %v2639
        %2657 = vmatpush.bf16.msra.mxu0 %v2638
        %2658 = vmatpush.bf16.msra.mxu0 %v2637
        %2659 = vmatpush.bf16.msra.mxu0 %v2636
        %2660 = vmatmul.bf16.gmra.mxu0 %v2582
        %v2661 = vpop.f32.mrf.mxu0
        %v2662 = vadd.f32 %v2602, %v2661
        %v2663 = vpop.f32.mrf.mxu0
        %v2664 = vadd.f32 %v2602, %v2663
        %2665 = vmatmul.bf16.gmra.mxu0 %v2583
        %v2666 = vpop.f32.mrf.mxu0
        %v2667 = vadd.f32 %v2602, %v2666
        %v2668 = vpop.f32.mrf.mxu0
        %v2669 = vadd.f32 %v2602, %v2668
        %2670 = vdwg.mxu0
        %vm2671 = vcmask 97280
        %2672 = vst.msk [vmem:[%s319] sm:$0xff] %vm2671, %v2662
        %2673 = vst.msk [vmem:[%s319 + $0x8] sm:$0xff] %vm2671, %v2664
        %2674 = vst.msk [vmem:[%s319 + $0x10] sm:$0xff] %vm2671, %v2667
        %2675 = vst.msk [vmem:[%s319 + $0x18] sm:$0xff] %vm2671, %v2669
        %s2676 = smul.u32 2, %s20
        %p2677 = scmp.lt.s32.totalorder %s2676, 3
        %s2678 = scalar_select %p2677, %s2676, 3
        %s2679 = smul.addr %s2678, 2
        %s2680 = smul.addr %s2679, 8
        %s2681 = scalar_lea.vmem %s7, %s2680
        // Predicated region
        $region57: #{tpu_custom_call.1} parent=47 // pred_check
          %p2682 = pneg %p190
        $region58: #{tpu_custom_call.1} parent=47 // pred_check_branch
          %2684 = sbr.rel (%p2682) target = $region60
        $region59: #{tpu_custom_call.1} parent=47 // pred_region
          %s2685 = smul.u32 2, %s20
        $region60: #{tpu_custom_call.1} parent=47 // pred_fallthru
          _
      $region48: #{tpu_custom_call.1} parent=5 // pred_fallthru
        _
      %p2686 = scmp.le.s32.totalorder 2, %s15
      // Predicated region
      $region61: #{tpu_custom_call.1} parent=5 // pred_check
        %p2687 = pneg %p2686
      $region62: #{tpu_custom_call.1} parent=5 // pred_check_branch
        %2689 = sbr.rel (%p2687) target = $region64
      $region63: #{tpu_custom_call.1} parent=5 // pred_region
        %s2690 = ssub.s32 %s15, 2
        // Predicated region
        $region65: #{tpu_custom_call.1} parent=63 // pred_check
          %p2691 = pneg %p196
        $region66: #{tpu_custom_call.1} parent=63 // pred_check_branch
          %2693 = sbr.rel (%p2691) target = $region68
        $region67: #{tpu_custom_call.1} parent=63 // pred_region
          %s2694 = smul.u32 2, %s21
          %p2695 = scmp.lt.s32.totalorder %s2694, 3
          %s2696 = scalar_select %p2695, %s2694, 3
          %s2697 = smul.addr %s2696, 2
          %s2698 = smul.addr %s2697, 8
          %s2699 = scalar_lea.vmem %s7, %s2698
        $region68: #{tpu_custom_call.1} parent=63 // pred_fallthru
          _
      $region64: #{tpu_custom_call.1} parent=5 // pred_fallthru
        _
    $region6: #{tpu_custom_call.1} parent=1 // loop_footer
      %s19 = sadd.s32 1, %s15
    $region7: #{tpu_custom_call.1} parent=1 // loop_footer_branch
      %14 = sbr.rel target = $region3
    $region8: #{tpu_custom_call.1} parent=1 // loop_exit
      _
    %2700 = vsyncpa [#allocation4], 1
    %s2701 = scalar_lea.sflag [#allocation4], 1
    %2702 = vsyncpa %s2701, 1
    %2703 = vsyncpa [#allocation6], 1

</llo_original>
